<compile_context>
chip_gen: v7x
topology: tpu7x:2x2x1
jax: 0.10.0
libtpu: 0.0.40
codegen_flags: <defaults>
</compile_context>

<pallas_src>
import functools
import math

import jax
import jax.numpy as jnp
from jax import lax
from jax.experimental import pallas as pl
from jax.experimental.pallas import tpu as pltpu


def _lstm_chunk_kernel(x_ref, w_ih_ref, w_hh_ref, bias_ref,
                       out_ref, h_out_ref, c_out_ref,
                       pre_sc, h_sc, c_sc,
                       *, hidden, t_chunk, t_valid):
    """One grid step == one chunk of `t_chunk` LSTM time steps.

    x_ref    : (Tc, Bp, F)   raw inputs for this time chunk (time-major)
    w_ih_ref : (F, 4H)       input->hidden weights (pre-transposed, resident)
    w_hh_ref : (H, 4H)       hidden->hidden weights (pre-transposed, resident)
    bias_ref : (1, 4H)       b_ih + b_hh (resident)
    out_ref  : (Bp, Tc*H)    hidden states, lane-packed: step t at lanes [t*H,(t+1)*H)
    h_out_ref: (Bp, H)       final hidden state (written on last chunk only)
    c_out_ref: (Bp, H)       final cell state   (written on last chunk only)
    pre_sc   : (Tc, Bp, 4H)  f32 scratch holding the fused input projection
    h_sc,c_sc: (Bp, H)       f32 carries, persist across grid steps
    """
    blk = pl.program_id(0)
    n_blk = pl.num_programs(0)

    @pl.when(blk == 0)
    def _():
        h_sc[...] = jnp.zeros_like(h_sc)
        c_sc[...] = jnp.zeros_like(c_sc)

    tc, bp, feat = x_ref.shape
    h4 = 4 * hidden

    # ---- Fused, time-parallel input projection for the whole chunk --------
    # Bp is a multiple of 8 sublanes, so merging (Tc, Bp) is tile-aligned.
    x_flat = x_ref[...].reshape(tc * bp, feat)
    pre = jnp.dot(x_flat, w_ih_ref[...],
                  preferred_element_type=jnp.float32) + bias_ref[...]
    pre_sc[...] = pre.reshape(tc, bp, h4)

    w_hh = w_hh_ref[...]                       # resident weight, loaded once/chunk

    # Lane mask selecting the g-gate region [2H, 3H) of the (Bp, 4H) gates.
    lane = lax.broadcasted_iota(jnp.int32, (bp, h4), 1)
    g_mask = (lane >= 2 * hidden) & (lane < 3 * hidden)

    h = h_sc[...]
    c = c_sc[...]

    # Static Python unroll: Tc is capped small, and static t gives static
    # lane offsets for the packed output stores and pre_sc[t] loads.
    for t in range(t_chunk):
        # Only the hidden->hidden matmul remains on the sequential path.
        gates = pre_sc[t] + jnp.dot(h, w_hh, preferred_element_type=jnp.float32)
        # Two full-vreg EUP passes + select instead of 4 sliced activations.
        act = jnp.where(g_mask, jnp.tanh(gates), jax.nn.sigmoid(gates))
        i_g = act[:, 0 * hidden:1 * hidden]
        f_g = act[:, 1 * hidden:2 * hidden]
        g_g = act[:, 2 * hidden:3 * hidden]
        o_g = act[:, 3 * hidden:4 * hidden]
        c_new = f_g * c + i_g * g_g
        h_new = o_g * jnp.tanh(c_new)
        if t_valid is not None:
            # Padded tail chunk: freeze the carry on steps past the real T.
            valid = (blk * t_chunk + t) < t_valid
            h_new = jnp.where(valid, h_new, h)
            c_new = jnp.where(valid, c_new, c)
        h, c = h_new, c_new
        # Lane-packed store at a static offset; the whole chunk writes back to
        # HBM as one dense (Bp, Tc*H) slab.
        out_ref[:, t * hidden:(t + 1) * hidden] = h

    h_sc[...] = h
    c_sc[...] = c

    @pl.when(blk == n_blk - 1)
    def _():
        h_out_ref[...] = h
        c_out_ref[...] = c


def _pick_time_chunk(seq_len, batch_p, feat, hidden, *,
                     max_chunk=32, vmem_budget_bytes=8 * 1024 * 1024):
    """Largest Tc (<= max_chunk) whose blocks + scratch fit the VMEM budget."""
    h4 = 4 * hidden
    fixed = 4 * (feat * h4 + hidden * h4 + h4       # resident W_ih^T, W_hh^T, bias
                 + 4 * batch_p * hidden)            # h/c carries + h_n/c_n blocks
    per_tc = 4 * (2 * batch_p * feat                # x chunk, double-buffered
                  + 2 * batch_p * hidden            # packed out chunk, double-buffered
                  + batch_p * h4)                   # pre-gate scratch
    tc = (vmem_budget_bytes - fixed) // per_tc
    tc = int(max(1, min(max_chunk, seq_len, tc)))
    return tc


def encoder_lstm_forward(x, w_ih, w_hh, b_ih, b_hh, *, max_time_chunk=32):
    """Forward pass of EncoderLSTM.

    x    : (B, T, F)  float32, batch-first like PyTorch
    w_ih : (4H, F), w_hh: (4H, H), b_ih/b_hh: (4H,)
    Returns (output (B, T, H), (h_n (1, B, H), c_n (1, B, H)))
    """
    B, T, F = x.shape
    H4 = w_ih.shape[0]
    H = H4 // 4

    w_ih_t = jnp.transpose(w_ih).astype(jnp.float32)     # (F, 4H), resident
    w_hh_t = jnp.transpose(w_hh).astype(jnp.float32)     # (H, 4H), resident
    bias = (b_ih + b_hh).astype(jnp.float32)[None, :]    # (1, 4H), resident

    # Only raw x streams from HBM (time-major); the 4H-wide projection never
    # round-trips through HBM.
    x_tm = jnp.transpose(x.astype(jnp.float32), (1, 0, 2))   # (T, B, F)

    Bp = ((B + 7) // 8) * 8           # sublane-aligned recurrent tiles
    if Bp != B:
        x_tm = jnp.pad(x_tm, ((0, 0), (0, Bp - B), (0, 0)))

    Tc = _pick_time_chunk(T, Bp, F, H, max_chunk=max_time_chunk)
    Tp = ((T + Tc - 1) // Tc) * Tc    # pad T so grid tiles it exactly
    if Tp != T:
        x_tm = jnp.pad(x_tm, ((0, Tp - T), (0, 0), (0, 0)))
    grid = (Tp // Tc,)

    # Explicit scoped-VMEM budget (v5e default is only 16 MiB).
    resident_b = 4 * (F * H4 + H * H4 + H4 + 4 * Bp * H)
    chunk_b = 4 * (2 * Tc * Bp * F + 2 * Bp * Tc * H + Tc * Bp * H4)
    vmem_limit = int(min(96 << 20, max(16 << 20, 4 * (resident_b + chunk_b))))

    kernel = functools.partial(_lstm_chunk_kernel, hidden=H, t_chunk=Tc,
                               t_valid=None if Tp == T else T)

    out_packed, h_n, c_n = pl.pallas_call(
        kernel,
        out_shape=(
            jax.ShapeDtypeStruct((Bp, Tp * H), jnp.float32),
            jax.ShapeDtypeStruct((Bp, H), jnp.float32),
            jax.ShapeDtypeStruct((Bp, H), jnp.float32),
        ),
        grid_spec=pltpu.PrefetchScalarGridSpec(
            num_scalar_prefetch=0,
            grid=grid,
            in_specs=[
                pl.BlockSpec((Tc, Bp, F), lambda i: (i, 0, 0)),   # x chunk
                pl.BlockSpec((F, H4), lambda i: (0, 0)),          # W_ih^T (resident)
                pl.BlockSpec((H, H4), lambda i: (0, 0)),          # W_hh^T (resident)
                pl.BlockSpec((1, H4), lambda i: (0, 0)),          # bias   (resident)
            ],
            out_specs=[
                pl.BlockSpec((Bp, Tc * H), lambda i: (0, i)),     # packed hidden states
                pl.BlockSpec((Bp, H), lambda i: (0, 0)),          # h_n
                pl.BlockSpec((Bp, H), lambda i: (0, 0)),          # c_n
            ],
            scratch_shapes=[
                pltpu.VMEM((Tc, Bp, H4), jnp.float32),   # fused pre-gates chunk
                pltpu.VMEM((Bp, H), jnp.float32),        # h carry
                pltpu.VMEM((Bp, H), jnp.float32),        # c carry
            ],
        ),
        compiler_params=pltpu.CompilerParams(
            # The time-chunk axis carries the recurrence -> must stay sequential.
            dimension_semantics=("arbitrary",),
            vmem_limit_bytes=vmem_limit,
        ),
    )(x_tm, w_ih_t, w_hh_t, bias)

    # (Bp, Tp*H) lane-packed -> (B, T, H): a free reshape + slice, no transpose.
    output = out_packed[:B].reshape(B, Tp, H)[:, :T, :]
    return output, (h_n[None, :B, :], c_n[None, :B, :])


def _xavier_uniform(key, shape):
    # PyTorch xavier_uniform_ on a (fan_out, fan_in) 2-D weight.
    fan_out, fan_in = shape
    bound = math.sqrt(6.0 / (fan_in + fan_out))
    return jax.random.uniform(key, shape, jnp.float32, -bound, bound)


def _lstm_reference(x, w_ih, w_hh, b_ih, b_hh):
    """Pure-JAX reference (scan) mirroring torch.nn.LSTM forward."""
    B, T, F = x.shape
    H = w_hh.shape[1]
    w_ih_t, w_hh_t = w_ih.T, w_hh.T
    bias = b_ih + b_hh

    def step(carry, x_t):
        h, c = carry
        g = x_t @ w_ih_t + h @ w_hh_t + bias
        i = jax.nn.sigmoid(g[:, 0 * H:1 * H])
        f = jax.nn.sigmoid(g[:, 1 * H:2 * H])
        gg = jnp.tanh(g[:, 2 * H:3 * H])
        o = jax.nn.sigmoid(g[:, 3 * H:4 * H])
        c_new = f * c + i * gg
        h_new = o * jnp.tanh(c_new)
        return (h_new, c_new), h_new

    init = (jnp.zeros((B, H), jnp.float32), jnp.zeros((B, H), jnp.float32))
    (h_n, c_n), ys = jax.lax.scan(step, init, jnp.transpose(x, (1, 0, 2)))
    return jnp.transpose(ys, (1, 0, 2)), (h_n[None], c_n[None])


if __name__ == "__main__":
    hidden_dim = 32
    feature_dim = 16
    batch = 2
    seq = 8

    key = jax.random.PRNGKey(0)
    k_x, k_wih, k_whh, k_bih, k_bhh = jax.random.split(key, 5)

    x = jax.random.normal(k_x, (batch, seq, feature_dim), jnp.float32)

    # Deterministic parameter init (shapes from nn.LSTM(feature_dim, hidden_dim)).
    w_ih = _xavier_uniform(k_wih, (4 * hidden_dim, feature_dim))
    w_hh = _xavier_uniform(k_whh, (4 * hidden_dim, hidden_dim))
    stdv = 1.0 / math.sqrt(hidden_dim)
    b_ih = jax.random.uniform(k_bih, (4 * hidden_dim,), jnp.float32, -stdv, stdv)
    b_hh = jax.random.uniform(k_bhh, (4 * hidden_dim,), jnp.float32, -stdv, stdv)

    out, (h_n, c_n) = encoder_lstm_forward(x, w_ih, w_hh, b_ih, b_hh)
    jax.block_until_ready((out, h_n, c_n))

    # Correctness check against a pure-JAX scan reference.  Tolerance allows
    # for TPU DEFAULT-precision f32 matmuls (bf16 MXU passes) on both paths;
    # set precision=HIGHEST everywhere if bit-level parity is required.
    out_ref, (h_ref, c_ref) = _lstm_reference(x, w_ih, w_hh, b_ih, b_hh)
    assert out.shape == (batch, seq, hidden_dim)
    assert h_n.shape == (1, batch, hidden_dim)
    assert c_n.shape == (1, batch, hidden_dim)
    assert jnp.allclose(out, out_ref, atol=5e-4, rtol=1e-3)
    assert jnp.allclose(h_n, h_ref, atol=5e-4, rtol=1e-3)
    assert jnp.allclose(c_n, c_ref, atol=5e-4, rtol=1e-3)

    print("KERNEL_OK")
</pallas_src>

<mosaic_0001>
module attributes {stable_mosaic.version = 11 : i64} {
  func.func @_lstm_chunk_kernel(%arg0: i32, %arg1: memref<8x8x16xf32, #tpu.memory_space<vmem>>, %arg2: memref<16x128xf32, #tpu.memory_space<vmem>>, %arg3: memref<32x128xf32, #tpu.memory_space<vmem>>, %arg4: memref<1x128xf32, #tpu.memory_space<vmem>>, %arg5: memref<8x256xf32, #tpu.memory_space<vmem>>, %arg6: memref<8x32xf32, #tpu.memory_space<vmem>>, %arg7: memref<8x32xf32, #tpu.memory_space<vmem>>, %arg8: memref<8x8x128xf32, #tpu.memory_space<vmem>>, %arg9: memref<8x32xf32, #tpu.memory_space<vmem>>, %arg10: memref<8x32xf32, #tpu.memory_space<vmem>>) attributes {dimension_semantics = [#tpu.dimension_semantics<arbitrary>], iteration_bounds = array<i64: 1>, scalar_prefetch = 0 : i64, scratch_operands = 3 : i64, tpu.core_type = #tpu.core_type<tc>, window_params = [{transform_indices = @transform_0, window_bounds = array<i64: 8, 8, 16>}, {pipeline_mode = #tpu.pipeline_mode<synchronous>, transform_indices = @transform_1, window_bounds = array<i64: 16, 128>}, {pipeline_mode = #tpu.pipeline_mode<synchronous>, transform_indices = @transform_2, window_bounds = array<i64: 32, 128>}, {pipeline_mode = #tpu.pipeline_mode<synchronous>, transform_indices = @transform_3, window_bounds = array<i64: 1, 128>}, {transform_indices = @transform_4, window_bounds = array<i64: 8, 256>}, {pipeline_mode = #tpu.pipeline_mode<synchronous>, transform_indices = @transform_5, window_bounds = array<i64: 8, 32>}, {pipeline_mode = #tpu.pipeline_mode<synchronous>, transform_indices = @transform_6, window_bounds = array<i64: 8, 32>}]} {
    %c0_i32 = arith.constant 0 : i32
    %0 = arith.cmpi eq, %arg0, %c0_i32 : i32
    %1 = arith.extui %0 : i1 to i32
    %c0_i32_0 = arith.constant 0 : i32
    %2 = arith.cmpi ne, %1, %c0_i32_0 : i32
    scf.if %2 {
      %cst_64 = arith.constant 0.000000e+00 : f32
      %194 = vector.broadcast %cst_64 : f32 to vector<8x32xf32>
      %c0_65 = arith.constant 0 : index
      %c0_66 = arith.constant 0 : index
      %195 = vector.load %arg9[%c0_65, %c0_66] : memref<8x32xf32, #tpu.memory_space<vmem>>, vector<8x32xf32>
      tpu.vector_store %arg9[%c0_65, %c0_66], %194 {strides = array<i32>} : memref<8x32xf32, #tpu.memory_space<vmem>>, vector<8x32xf32>,
      %cst_67 = arith.constant 0.000000e+00 : f32
      %196 = vector.broadcast %cst_67 : f32 to vector<8x32xf32>
      %c0_68 = arith.constant 0 : index
      %c0_69 = arith.constant 0 : index
      %197 = vector.load %arg10[%c0_68, %c0_69] : memref<8x32xf32, #tpu.memory_space<vmem>>, vector<8x32xf32>
      tpu.vector_store %arg10[%c0_68, %c0_69], %196 {strides = array<i32>} : memref<8x32xf32, #tpu.memory_space<vmem>>, vector<8x32xf32>,
    } else {
    }
    %c0 = arith.constant 0 : index
    %c0_1 = arith.constant 0 : index
    %c0_2 = arith.constant 0 : index
    %3 = vector.load %arg1[%c0, %c0_1, %c0_2] : memref<8x8x16xf32, #tpu.memory_space<vmem>>, vector<8x8x16xf32>
    %4 = vector.shape_cast %3 : vector<8x8x16xf32> to vector<64x16xf32>
    %c0_3 = arith.constant 0 : index
    %c0_4 = arith.constant 0 : index
    %5 = vector.load %arg2[%c0_3, %c0_4] : memref<16x128xf32, #tpu.memory_space<vmem>>, vector<16x128xf32>
    %cst = arith.constant dense<0.000000e+00> : vector<64x128xf32>
    %6 = tpu.matmul %4, %5, %cst {dimension_numbers = #tpu.dot_dimension_numbers<[1], [0], [0], [1], [0, 0, 1, 1], [], []>} : vector<64x16xf32>, vector<16x128xf32>, vector<64x128xf32> -> vector<64x128xf32>
    %c0_5 = arith.constant 0 : index
    %c0_6 = arith.constant 0 : index
    %7 = vector.load %arg4[%c0_5, %c0_6] : memref<1x128xf32, #tpu.memory_space<vmem>>, vector<1x128xf32>
    %8 = vector.broadcast %7 : vector<1x128xf32> to vector<64x128xf32>
    %9 = arith.addf %6, %8 : vector<64x128xf32>
    %10 = vector.shape_cast %9 : vector<64x128xf32> to vector<8x8x128xf32>
    %c0_7 = arith.constant 0 : index
    %c0_8 = arith.constant 0 : index
    %c0_9 = arith.constant 0 : index
    %11 = vector.load %arg8[%c0_7, %c0_8, %c0_9] : memref<8x8x128xf32, #tpu.memory_space<vmem>>, vector<8x8x128xf32>
    tpu.vector_store %arg8[%c0_7, %c0_8, %c0_9], %10 {strides = array<i32>} : memref<8x8x128xf32, #tpu.memory_space<vmem>>, vector<8x8x128xf32>,
    %c0_10 = arith.constant 0 : index
    %c0_11 = arith.constant 0 : index
    %12 = vector.load %arg3[%c0_10, %c0_11] : memref<32x128xf32, #tpu.memory_space<vmem>>, vector<32x128xf32>
    %13 = tpu.iota {dimensions = array<i32: 1>} : vector<8x128xi32>
    %c64_i32 = arith.constant 64 : i32
    %14 = vector.broadcast %c64_i32 : i32 to vector<8x128xi32>
    %15 = arith.cmpi sge, %13, %14 : vector<8x128xi32>
    %c96_i32 = arith.constant 96 : i32
    %16 = vector.broadcast %c96_i32 : i32 to vector<8x128xi32>
    %17 = arith.cmpi slt, %13, %16 : vector<8x128xi32>
    %18 = arith.andi %15, %17 : vector<8x128xi1>
    %c0_12 = arith.constant 0 : index
    %c0_13 = arith.constant 0 : index
    %19 = vector.load %arg9[%c0_12, %c0_13] : memref<8x32xf32, #tpu.memory_space<vmem>>, vector<8x32xf32>
    %c0_14 = arith.constant 0 : index
    %c0_15 = arith.constant 0 : index
    %20 = vector.load %arg10[%c0_14, %c0_15] : memref<8x32xf32, #tpu.memory_space<vmem>>, vector<8x32xf32>
    %c0_16 = arith.constant 0 : index
    %c0_17 = arith.constant 0 : index
    %c0_18 = arith.constant 0 : index
    %21 = vector.load %arg8[%c0_16, %c0_17, %c0_18] : memref<8x8x128xf32, #tpu.memory_space<vmem>>, vector<1x8x128xf32>
    %22 = vector.shape_cast %21 : vector<1x8x128xf32> to vector<8x128xf32>
    %cst_19 = arith.constant dense<0.000000e+00> : vector<8x128xf32>
    %23 = tpu.matmul %19, %12, %cst_19 {dimension_numbers = #tpu.dot_dimension_numbers<[1], [0], [0], [1], [0, 0, 1, 1], [], []>} : vector<8x32xf32>, vector<32x128xf32>, vector<8x128xf32> -> vector<8x128xf32>
    %24 = arith.addf %22, %23 : vector<8x128xf32>
    %25 = math.tanh %24 : vector<8x128xf32>
    %26 = arith.negf %24 : vector<8x128xf32>
    %27 = math.exp %26 : vector<8x128xf32>
    %cst_20 = arith.constant 1.000000e+00 : f32
    %28 = vector.broadcast %cst_20 : f32 to vector<8x128xf32>
    %29 = arith.addf %28, %27 : vector<8x128xf32>
    %30 = arith.divf %28, %29 : vector<8x128xf32>
    %31 = arith.select %18, %25, %30 : vector<8x128xi1>, vector<8x128xf32>
    %32 = vector.extract_strided_slice %31 {offsets = [0, 0], sizes = [8, 32], strides = [1, 1]} : vector<8x128xf32> to vector<8x32xf32>
    %33 = vector.extract_strided_slice %31 {offsets = [0, 32], sizes = [8, 32], strides = [1, 1]} : vector<8x128xf32> to vector<8x32xf32>
    %34 = vector.extract_strided_slice %31 {offsets = [0, 64], sizes = [8, 32], strides = [1, 1]} : vector<8x128xf32> to vector<8x32xf32>
    %35 = vector.extract_strided_slice %31 {offsets = [0, 96], sizes = [8, 32], strides = [1, 1]} : vector<8x128xf32> to vector<8x32xf32>
    %36 = arith.mulf %33, %20 : vector<8x32xf32>
    %37 = arith.mulf %32, %34 : vector<8x32xf32>
    %38 = arith.addf %36, %37 : vector<8x32xf32>
    %39 = math.tanh %38 : vector<8x32xf32>
    %40 = arith.mulf %35, %39 : vector<8x32xf32>
    %c0_21 = arith.constant 0 : index
    %c0_22 = arith.constant 0 : index
    %41 = vector.load %arg5[%c0_21, %c0_22] : memref<8x256xf32, #tpu.memory_space<vmem>>, vector<8x32xf32>
    tpu.vector_store %arg5[%c0_21, %c0_22], %40 {strides = array<i32>} : memref<8x256xf32, #tpu.memory_space<vmem>>, vector<8x32xf32>,
    %c1 = arith.constant 1 : index
    %c0_23 = arith.constant 0 : index
    %c0_24 = arith.constant 0 : index
    %42 = vector.load %arg8[%c1, %c0_23, %c0_24] : memref<8x8x128xf32, #tpu.memory_space<vmem>>, vector<1x8x128xf32>
    %43 = vector.shape_cast %42 : vector<1x8x128xf32> to vector<8x128xf32>
    %cst_25 = arith.constant dense<0.000000e+00> : vector<8x128xf32>
    %44 = tpu.matmul %40, %12, %cst_25 {dimension_numbers = #tpu.dot_dimension_numbers<[1], [0], [0], [1], [0, 0, 1, 1], [], []>} : vector<8x32xf32>, vector<32x128xf32>, vector<8x128xf32> -> vector<8x128xf32>
    %45 = arith.addf %43, %44 : vector<8x128xf32>
    %46 = math.tanh %45 : vector<8x128xf32>
    %47 = arith.negf %45 : vector<8x128xf32>
    %48 = math.exp %47 : vector<8x128xf32>
    %cst_26 = arith.constant 1.000000e+00 : f32
    %49 = vector.broadcast %cst_26 : f32 to vector<8x128xf32>
    %50 = arith.addf %49, %48 : vector<8x128xf32>
    %51 = arith.divf %49, %50 : vector<8x128xf32>
    %52 = arith.select %18, %46, %51 : vector<8x128xi1>, vector<8x128xf32>
    %53 = vector.extract_strided_slice %52 {offsets = [0, 0], sizes = [8, 32], strides = [1, 1]} : vector<8x128xf32> to vector<8x32xf32>
    %54 = vector.extract_strided_slice %52 {offsets = [0, 32], sizes = [8, 32], strides = [1, 1]} : vector<8x128xf32> to vector<8x32xf32>
    %55 = vector.extract_strided_slice %52 {offsets = [0, 64], sizes = [8, 32], strides = [1, 1]} : vector<8x128xf32> to vector<8x32xf32>
    %56 = vector.extract_strided_slice %52 {offsets = [0, 96], sizes = [8, 32], strides = [1, 1]} : vector<8x128xf32> to vector<8x32xf32>
    %57 = arith.mulf %54, %38 : vector<8x32xf32>
    %58 = arith.mulf %53, %55 : vector<8x32xf32>
    %59 = arith.addf %57, %58 : vector<8x32xf32>
    %60 = math.tanh %59 : vector<8x32xf32>
    %61 = arith.mulf %56, %60 : vector<8x32xf32>
    %c0_27 = arith.constant 0 : index
    %c32 = arith.constant 32 : index
    %62 = vector.load %arg5[%c0_27, %c32] : memref<8x256xf32, #tpu.memory_space<vmem>>, vector<8x32xf32>
    tpu.vector_store %arg5[%c0_27, %c32], %61 {strides = array<i32>} : memref<8x256xf32, #tpu.memory_space<vmem>>, vector<8x32xf32>,
    %c2 = arith.constant 2 : index
    %c0_28 = arith.constant 0 : index
    %c0_29 = arith.constant 0 : index
    %63 = vector.load %arg8[%c2, %c0_28, %c0_29] : memref<8x8x128xf32, #tpu.memory_space<vmem>>, vector<1x8x128xf32>
    %64 = vector.shape_cast %63 : vector<1x8x128xf32> to vector<8x128xf32>
    %cst_30 = arith.constant dense<0.000000e+00> : vector<8x128xf32>
    %65 = tpu.matmul %61, %12, %cst_30 {dimension_numbers = #tpu.dot_dimension_numbers<[1], [0], [0], [1], [0, 0, 1, 1], [], []>} : vector<8x32xf32>, vector<32x128xf32>, vector<8x128xf32> -> vector<8x128xf32>
    %66 = arith.addf %64, %65 : vector<8x128xf32>
    %67 = math.tanh %66 : vector<8x128xf32>
    %68 = arith.negf %66 : vector<8x128xf32>
    %69 = math.exp %68 : vector<8x128xf32>
    %cst_31 = arith.constant 1.000000e+00 : f32
    %70 = vector.broadcast %cst_31 : f32 to vector<8x128xf32>
    %71 = arith.addf %70, %69 : vector<8x128xf32>
    %72 = arith.divf %70, %71 : vector<8x128xf32>
    %73 = arith.select %18, %67, %72 : vector<8x128xi1>, vector<8x128xf32>
    %74 = vector.extract_strided_slice %73 {offsets = [0, 0], sizes = [8, 32], strides = [1, 1]} : vector<8x128xf32> to vector<8x32xf32>
    %75 = vector.extract_strided_slice %73 {offsets = [0, 32], sizes = [8, 32], strides = [1, 1]} : vector<8x128xf32> to vector<8x32xf32>
    %76 = vector.extract_strided_slice %73 {offsets = [0, 64], sizes = [8, 32], strides = [1, 1]} : vector<8x128xf32> to vector<8x32xf32>
    %77 = vector.extract_strided_slice %73 {offsets = [0, 96], sizes = [8, 32], strides = [1, 1]} : vector<8x128xf32> to vector<8x32xf32>
    %78 = arith.mulf %75, %59 : vector<8x32xf32>
    %79 = arith.mulf %74, %76 : vector<8x32xf32>
    %80 = arith.addf %78, %79 : vector<8x32xf32>
    %81 = math.tanh %80 : vector<8x32xf32>
    %82 = arith.mulf %77, %81 : vector<8x32xf32>
    %c0_32 = arith.constant 0 : index
    %c64 = arith.constant 64 : index
    %83 = vector.load %arg5[%c0_32, %c64] : memref<8x256xf32, #tpu.memory_space<vmem>>, vector<8x32xf32>
    tpu.vector_store %arg5[%c0_32, %c64], %82 {strides = array<i32>} : memref<8x256xf32, #tpu.memory_space<vmem>>, vector<8x32xf32>,
    %c3 = arith.constant 3 : index
    %c0_33 = arith.constant 0 : index
    %c0_34 = arith.constant 0 : index
    %84 = vector.load %arg8[%c3, %c0_33, %c0_34] : memref<8x8x128xf32, #tpu.memory_space<vmem>>, vector<1x8x128xf32>
    %85 = vector.shape_cast %84 : vector<1x8x128xf32> to vector<8x128xf32>
    %cst_35 = arith.constant dense<0.000000e+00> : vector<8x128xf32>
    %86 = tpu.matmul %82, %12, %cst_35 {dimension_numbers = #tpu.dot_dimension_numbers<[1], [0], [0], [1], [0, 0, 1, 1], [], []>} : vector<8x32xf32>, vector<32x128xf32>, vector<8x128xf32> -> vector<8x128xf32>
    %87 = arith.addf %85, %86 : vector<8x128xf32>
    %88 = math.tanh %87 : vector<8x128xf32>
    %89 = arith.negf %87 : vector<8x128xf32>
    %90 = math.exp %89 : vector<8x128xf32>
    %cst_36 = arith.constant 1.000000e+00 : f32
    %91 = vector.broadcast %cst_36 : f32 to vector<8x128xf32>
    %92 = arith.addf %91, %90 : vector<8x128xf32>
    %93 = arith.divf %91, %92 : vector<8x128xf32>
    %94 = arith.select %18, %88, %93 : vector<8x128xi1>, vector<8x128xf32>
    %95 = vector.extract_strided_slice %94 {offsets = [0, 0], sizes = [8, 32], strides = [1, 1]} : vector<8x128xf32> to vector<8x32xf32>
    %96 = vector.extract_strided_slice %94 {offsets = [0, 32], sizes = [8, 32], strides = [1, 1]} : vector<8x128xf32> to vector<8x32xf32>
    %97 = vector.extract_strided_slice %94 {offsets = [0, 64], sizes = [8, 32], strides = [1, 1]} : vector<8x128xf32> to vector<8x32xf32>
    %98 = vector.extract_strided_slice %94 {offsets = [0, 96], sizes = [8, 32], strides = [1, 1]} : vector<8x128xf32> to vector<8x32xf32>
    %99 = arith.mulf %96, %80 : vector<8x32xf32>
    %100 = arith.mulf %95, %97 : vector<8x32xf32>
    %101 = arith.addf %99, %100 : vector<8x32xf32>
    %102 = math.tanh %101 : vector<8x32xf32>
    %103 = arith.mulf %98, %102 : vector<8x32xf32>
    %c0_37 = arith.constant 0 : index
    %c96 = arith.constant 96 : index
    %104 = vector.load %arg5[%c0_37, %c96] : memref<8x256xf32, #tpu.memory_space<vmem>>, vector<8x32xf32>
    tpu.vector_store %arg5[%c0_37, %c96], %103 {strides = array<i32>} : memref<8x256xf32, #tpu.memory_space<vmem>>, vector<8x32xf32>,
    %c4 = arith.constant 4 : index
    %c0_38 = arith.constant 0 : index
    %c0_39 = arith.constant 0 : index
    %105 = vector.load %arg8[%c4, %c0_38, %c0_39] : memref<8x8x128xf32, #tpu.memory_space<vmem>>, vector<1x8x128xf32>
    %106 = vector.shape_cast %105 : vector<1x8x128xf32> to vector<8x128xf32>
    %cst_40 = arith.constant dense<0.000000e+00> : vector<8x128xf32>
    %107 = tpu.matmul %103, %12, %cst_40 {dimension_numbers = #tpu.dot_dimension_numbers<[1], [0], [0], [1], [0, 0, 1, 1], [], []>} : vector<8x32xf32>, vector<32x128xf32>, vector<8x128xf32> -> vector<8x128xf32>
    %108 = arith.addf %106, %107 : vector<8x128xf32>
    %109 = math.tanh %108 : vector<8x128xf32>
    %110 = arith.negf %108 : vector<8x128xf32>
    %111 = math.exp %110 : vector<8x128xf32>
    %cst_41 = arith.constant 1.000000e+00 : f32
    %112 = vector.broadcast %cst_41 : f32 to vector<8x128xf32>
    %113 = arith.addf %112, %111 : vector<8x128xf32>
    %114 = arith.divf %112, %113 : vector<8x128xf32>
    %115 = arith.select %18, %109, %114 : vector<8x128xi1>, vector<8x128xf32>
    %116 = vector.extract_strided_slice %115 {offsets = [0, 0], sizes = [8, 32], strides = [1, 1]} : vector<8x128xf32> to vector<8x32xf32>
    %117 = vector.extract_strided_slice %115 {offsets = [0, 32], sizes = [8, 32], strides = [1, 1]} : vector<8x128xf32> to vector<8x32xf32>
    %118 = vector.extract_strided_slice %115 {offsets = [0, 64], sizes = [8, 32], strides = [1, 1]} : vector<8x128xf32> to vector<8x32xf32>
    %119 = vector.extract_strided_slice %115 {offsets = [0, 96], sizes = [8, 32], strides = [1, 1]} : vector<8x128xf32> to vector<8x32xf32>
    %120 = arith.mulf %117, %101 : vector<8x32xf32>
    %121 = arith.mulf %116, %118 : vector<8x32xf32>
    %122 = arith.addf %120, %121 : vector<8x32xf32>
    %123 = math.tanh %122 : vector<8x32xf32>
    %124 = arith.mulf %119, %123 : vector<8x32xf32>
    %c0_42 = arith.constant 0 : index
    %c128 = arith.constant 128 : index
    %125 = vector.load %arg5[%c0_42, %c128] : memref<8x256xf32, #tpu.memory_space<vmem>>, vector<8x32xf32>
    tpu.vector_store %arg5[%c0_42, %c128], %124 {strides = array<i32>} : memref<8x256xf32, #tpu.memory_space<vmem>>, vector<8x32xf32>,
    %c5 = arith.constant 5 : index
    %c0_43 = arith.constant 0 : index
    %c0_44 = arith.constant 0 : index
    %126 = vector.load %arg8[%c5, %c0_43, %c0_44] : memref<8x8x128xf32, #tpu.memory_space<vmem>>, vector<1x8x128xf32>
    %127 = vector.shape_cast %126 : vector<1x8x128xf32> to vector<8x128xf32>
    %cst_45 = arith.constant dense<0.000000e+00> : vector<8x128xf32>
    %128 = tpu.matmul %124, %12, %cst_45 {dimension_numbers = #tpu.dot_dimension_numbers<[1], [0], [0], [1], [0, 0, 1, 1], [], []>} : vector<8x32xf32>, vector<32x128xf32>, vector<8x128xf32> -> vector<8x128xf32>
    %129 = arith.addf %127, %128 : vector<8x128xf32>
    %130 = math.tanh %129 : vector<8x128xf32>
    %131 = arith.negf %129 : vector<8x128xf32>
    %132 = math.exp %131 : vector<8x128xf32>
    %cst_46 = arith.constant 1.000000e+00 : f32
    %133 = vector.broadcast %cst_46 : f32 to vector<8x128xf32>
    %134 = arith.addf %133, %132 : vector<8x128xf32>
    %135 = arith.divf %133, %134 : vector<8x128xf32>
    %136 = arith.select %18, %130, %135 : vector<8x128xi1>, vector<8x128xf32>
    %137 = vector.extract_strided_slice %136 {offsets = [0, 0], sizes = [8, 32], strides = [1, 1]} : vector<8x128xf32> to vector<8x32xf32>
    %138 = vector.extract_strided_slice %136 {offsets = [0, 32], sizes = [8, 32], strides = [1, 1]} : vector<8x128xf32> to vector<8x32xf32>
    %139 = vector.extract_strided_slice %136 {offsets = [0, 64], sizes = [8, 32], strides = [1, 1]} : vector<8x128xf32> to vector<8x32xf32>
    %140 = vector.extract_strided_slice %136 {offsets = [0, 96], sizes = [8, 32], strides = [1, 1]} : vector<8x128xf32> to vector<8x32xf32>
    %141 = arith.mulf %138, %122 : vector<8x32xf32>
    %142 = arith.mulf %137, %139 : vector<8x32xf32>
    %143 = arith.addf %141, %142 : vector<8x32xf32>
    %144 = math.tanh %143 : vector<8x32xf32>
    %145 = arith.mulf %140, %144 : vector<8x32xf32>
    %c0_47 = arith.constant 0 : index
    %c160 = arith.constant 160 : index
    %146 = vector.load %arg5[%c0_47, %c160] : memref<8x256xf32, #tpu.memory_space<vmem>>, vector<8x32xf32>
    tpu.vector_store %arg5[%c0_47, %c160], %145 {strides = array<i32>} : memref<8x256xf32, #tpu.memory_space<vmem>>, vector<8x32xf32>,
    %c6 = arith.constant 6 : index
    %c0_48 = arith.constant 0 : index
    %c0_49 = arith.constant 0 : index
    %147 = vector.load %arg8[%c6, %c0_48, %c0_49] : memref<8x8x128xf32, #tpu.memory_space<vmem>>, vector<1x8x128xf32>
    %148 = vector.shape_cast %147 : vector<1x8x128xf32> to vector<8x128xf32>
    %cst_50 = arith.constant dense<0.000000e+00> : vector<8x128xf32>
    %149 = tpu.matmul %145, %12, %cst_50 {dimension_numbers = #tpu.dot_dimension_numbers<[1], [0], [0], [1], [0, 0, 1, 1], [], []>} : vector<8x32xf32>, vector<32x128xf32>, vector<8x128xf32> -> vector<8x128xf32>
    %150 = arith.addf %148, %149 : vector<8x128xf32>
    %151 = math.tanh %150 : vector<8x128xf32>
    %152 = arith.negf %150 : vector<8x128xf32>
    %153 = math.exp %152 : vector<8x128xf32>
    %cst_51 = arith.constant 1.000000e+00 : f32
    %154 = vector.broadcast %cst_51 : f32 to vector<8x128xf32>
    %155 = arith.addf %154, %153 : vector<8x128xf32>
    %156 = arith.divf %154, %155 : vector<8x128xf32>
    %157 = arith.select %18, %151, %156 : vector<8x128xi1>, vector<8x128xf32>
    %158 = vector.extract_strided_slice %157 {offsets = [0, 0], sizes = [8, 32], strides = [1, 1]} : vector<8x128xf32> to vector<8x32xf32>
    %159 = vector.extract_strided_slice %157 {offsets = [0, 32], sizes = [8, 32], strides = [1, 1]} : vector<8x128xf32> to vector<8x32xf32>
    %160 = vector.extract_strided_slice %157 {offsets = [0, 64], sizes = [8, 32], strides = [1, 1]} : vector<8x128xf32> to vector<8x32xf32>
    %161 = vector.extract_strided_slice %157 {offsets = [0, 96], sizes = [8, 32], strides = [1, 1]} : vector<8x128xf32> to vector<8x32xf32>
    %162 = arith.mulf %159, %143 : vector<8x32xf32>
    %163 = arith.mulf %158, %160 : vector<8x32xf32>
    %164 = arith.addf %162, %163 : vector<8x32xf32>
    %165 = math.tanh %164 : vector<8x32xf32>
    %166 = arith.mulf %161, %165 : vector<8x32xf32>
    %c0_52 = arith.constant 0 : index
    %c192 = arith.constant 192 : index
    %167 = vector.load %arg5[%c0_52, %c192] : memref<8x256xf32, #tpu.memory_space<vmem>>, vector<8x32xf32>
    tpu.vector_store %arg5[%c0_52, %c192], %166 {strides = array<i32>} : memref<8x256xf32, #tpu.memory_space<vmem>>, vector<8x32xf32>,
    %c7 = arith.constant 7 : index
    %c0_53 = arith.constant 0 : index
    %c0_54 = arith.constant 0 : index
    %168 = vector.load %arg8[%c7, %c0_53, %c0_54] : memref<8x8x128xf32, #tpu.memory_space<vmem>>, vector<1x8x128xf32>
    %169 = vector.shape_cast %168 : vector<1x8x128xf32> to vector<8x128xf32>
    %cst_55 = arith.constant dense<0.000000e+00> : vector<8x128xf32>
    %170 = tpu.matmul %166, %12, %cst_55 {dimension_numbers = #tpu.dot_dimension_numbers<[1], [0], [0], [1], [0, 0, 1, 1], [], []>} : vector<8x32xf32>, vector<32x128xf32>, vector<8x128xf32> -> vector<8x128xf32>
    %171 = arith.addf %169, %170 : vector<8x128xf32>
    %172 = math.tanh %171 : vector<8x128xf32>
    %173 = arith.negf %171 : vector<8x128xf32>
    %174 = math.exp %173 : vector<8x128xf32>
    %cst_56 = arith.constant 1.000000e+00 : f32
    %175 = vector.broadcast %cst_56 : f32 to vector<8x128xf32>
    %176 = arith.addf %175, %174 : vector<8x128xf32>
    %177 = arith.divf %175, %176 : vector<8x128xf32>
    %178 = arith.select %18, %172, %177 : vector<8x128xi1>, vector<8x128xf32>
    %179 = vector.extract_strided_slice %178 {offsets = [0, 0], sizes = [8, 32], strides = [1, 1]} : vector<8x128xf32> to vector<8x32xf32>
    %180 = vector.extract_strided_slice %178 {offsets = [0, 32], sizes = [8, 32], strides = [1, 1]} : vector<8x128xf32> to vector<8x32xf32>
    %181 = vector.extract_strided_slice %178 {offsets = [0, 64], sizes = [8, 32], strides = [1, 1]} : vector<8x128xf32> to vector<8x32xf32>
    %182 = vector.extract_strided_slice %178 {offsets = [0, 96], sizes = [8, 32], strides = [1, 1]} : vector<8x128xf32> to vector<8x32xf32>
    %183 = arith.mulf %180, %164 : vector<8x32xf32>
    %184 = arith.mulf %179, %181 : vector<8x32xf32>
    %185 = arith.addf %183, %184 : vector<8x32xf32>
    %186 = math.tanh %185 : vector<8x32xf32>
    %187 = arith.mulf %182, %186 : vector<8x32xf32>
    %c0_57 = arith.constant 0 : index
    %c224 = arith.constant 224 : index
    %188 = vector.load %arg5[%c0_57, %c224] : memref<8x256xf32, #tpu.memory_space<vmem>>, vector<8x32xf32>
    tpu.vector_store %arg5[%c0_57, %c224], %187 {strides = array<i32>} : memref<8x256xf32, #tpu.memory_space<vmem>>, vector<8x32xf32>,
    %c0_58 = arith.constant 0 : index
    %c0_59 = arith.constant 0 : index
    %189 = vector.load %arg9[%c0_58, %c0_59] : memref<8x32xf32, #tpu.memory_space<vmem>>, vector<8x32xf32>
    tpu.vector_store %arg9[%c0_58, %c0_59], %187 {strides = array<i32>} : memref<8x32xf32, #tpu.memory_space<vmem>>, vector<8x32xf32>,
    %c0_60 = arith.constant 0 : index
    %c0_61 = arith.constant 0 : index
    %190 = vector.load %arg10[%c0_60, %c0_61] : memref<8x32xf32, #tpu.memory_space<vmem>>, vector<8x32xf32>
    tpu.vector_store %arg10[%c0_60, %c0_61], %185 {strides = array<i32>} : memref<8x32xf32, #tpu.memory_space<vmem>>, vector<8x32xf32>,
    %c0_i32_62 = arith.constant 0 : i32
    %191 = arith.cmpi eq, %arg0, %c0_i32_62 : i32
    %192 = arith.extui %191 : i1 to i32
    %c0_i32_63 = arith.constant 0 : i32
    %193 = arith.cmpi ne, %192, %c0_i32_63 : i32
    scf.if %193 {
      %c0_64 = arith.constant 0 : index
      %c0_65 = arith.constant 0 : index
      %194 = vector.load %arg6[%c0_64, %c0_65] : memref<8x32xf32, #tpu.memory_space<vmem>>, vector<8x32xf32>
      tpu.vector_store %arg6[%c0_64, %c0_65], %187 {strides = array<i32>} : memref<8x32xf32, #tpu.memory_space<vmem>>, vector<8x32xf32>,
      %c0_66 = arith.constant 0 : index
      %c0_67 = arith.constant 0 : index
      %195 = vector.load %arg7[%c0_66, %c0_67] : memref<8x32xf32, #tpu.memory_space<vmem>>, vector<8x32xf32>
      tpu.vector_store %arg7[%c0_66, %c0_67], %185 {strides = array<i32>} : memref<8x32xf32, #tpu.memory_space<vmem>>, vector<8x32xf32>,
    } else {
    }
    return
  }
  func.func @transform_0(%arg0: i32) -> (i32, i32, i32) {
    %c0_i32 = arith.constant 0 : i32
    %c0_i32_0 = arith.constant 0 : i32
    %c0_i32_1 = arith.constant 0 : i32
    return %arg0, %c0_i32, %c0_i32_0 : i32, i32, i32
  }
  func.func @transform_1(%arg0: i32) -> (i32, i32) {
    %c0_i32 = arith.constant 0 : i32
    %c0_i32_0 = arith.constant 0 : i32
    %c0_i32_1 = arith.constant 0 : i32
    return %c0_i32, %c0_i32_0 : i32, i32
  }
  func.func @transform_2(%arg0: i32) -> (i32, i32) {
    %c0_i32 = arith.constant 0 : i32
    %c0_i32_0 = arith.constant 0 : i32
    %c0_i32_1 = arith.constant 0 : i32
    return %c0_i32, %c0_i32_0 : i32, i32
  }
  func.func @transform_3(%arg0: i32) -> (i32, i32) {
    %c0_i32 = arith.constant 0 : i32
    %c0_i32_0 = arith.constant 0 : i32
    %c0_i32_1 = arith.constant 0 : i32
    return %c0_i32, %c0_i32_0 : i32, i32
  }
  func.func @transform_4(%arg0: i32) -> (i32, i32) {
    %c0_i32 = arith.constant 0 : i32
    %c0_i32_0 = arith.constant 0 : i32
    return %c0_i32, %arg0 : i32, i32
  }
  func.func @transform_5(%arg0: i32) -> (i32, i32) {
    %c0_i32 = arith.constant 0 : i32
    %c0_i32_0 = arith.constant 0 : i32
    %c0_i32_1 = arith.constant 0 : i32
    return %c0_i32, %c0_i32_0 : i32, i32
  }
  func.func @transform_6(%arg0: i32) -> (i32, i32) {
    %c0_i32 = arith.constant 0 : i32
    %c0_i32_0 = arith.constant 0 : i32
    %c0_i32_1 = arith.constant 0 : i32
    return %c0_i32, %c0_i32_0 : i32, i32
  }
}

</mosaic_0001>

<llo_original>
// kernel: tpu_custom_call.1
$region0: #{tpu_custom_call.1}
  #allocation0 [shape = 'u32[]', space=smem, size = 0x4, offset = 0x4, fixed_abs, tag = 'smem constant byte address 0x4 - core index']
  #allocation1 [shape = 'u32[144,128]{1,0:T(1,128)}', space=vmem, size = 0x12000, scoped, tag = 'internal scratch']
  #allocation2 [shape = 'f32[8,8,128]{2,1,0:T(8,128)}', space=vmem, size = 0x8000, scoped, tag = 'scratch operand']
  #allocation3 [shape = 'f32[8,32]{1,0:T(8,128)}', space=vmem, size = 0x1000, scoped, tag = 'scratch operand']
  #allocation4 [shape = 'f32[8,32]{1,0:T(8,128)}', space=vmem, size = 0x1000, scoped, tag = 'scratch operand']
  %s0 = inlined_call_operand.hbm [shape: f32[8,8,16], index: 0, kind: input, shape index: {}]
  %s1 = inlined_call_operand.hbm [shape: f32[16,128], index: 1, kind: input, shape index: {}]
  %s2 = inlined_call_operand.hbm [shape: f32[32,128], index: 2, kind: input, shape index: {}]
  %s3 = inlined_call_operand.vmem [shape: f32[1,128], index: 3, kind: input, shape index: {}]
  %s4 = inlined_call_operand.hbm [shape: f32[8,256], index: 4, kind: output, shape index: {0}]
  %s5 = inlined_call_operand.hbm [shape: f32[8,32], index: 5, kind: output, shape index: {1}]
  %s6 = inlined_call_operand.hbm [shape: f32[8,32], index: 6, kind: output, shape index: {2}]
  %7 = xla_tuple %s4, %s5, %s6
  %s8 = sld [smem:[#allocation0]]
  $region62: #{tpu_custom_call.1} parent=0
    _
  %s10 = ssub.s32 1, %s8
  %s11 = scalar_select 0, %s10, %s8
  $region1: #{tpu_custom_call.1} parent=0
    #allocation5 [shape = 'u8[32768]{0}', space=vmem, size = 0x8000, scoped, tag = 'input window, operand 0, single buffered']
    #allocation6 [shape = 's32[1]{0}', space=sflag, size = 0x4, scoped, tag = 'scoped memory for tpu_custom_call.1']
    #allocation7 [shape = 's32[1]{0}', space=sflag, size = 0x4, scoped, tag = 'scoped memory for tpu_custom_call.1']
    #allocation8 [shape = 'u8[8192]{0}', space=vmem, size = 0x2000, scoped, tag = 'input window, operand 1, single buffered']
    #allocation9 [shape = 's32[1]{0}', space=sflag, size = 0x4, scoped, tag = 'scoped memory for tpu_custom_call.1']
    #allocation10 [shape = 'u8[16384]{0}', space=vmem, size = 0x4000, scoped, tag = 'input window, operand 2, single buffered']
    #allocation11 [shape = 'u8[8192]{0}', space=vmem, size = 0x2000, scoped, tag = 'output window, operand 0, single buffered']
    #allocation12 [shape = 'u8[4096]{0}', space=vmem, size = 0x1000, scoped, tag = 'output window, operand 1, single buffered']
    #allocation13 [shape = 's32[1]{0}', space=sflag, size = 0x4, scoped, tag = 'scoped memory for tpu_custom_call.1']
    #allocation14 [shape = 'u8[4096]{0}', space=vmem, size = 0x1000, scoped, tag = 'output window, operand 2, single buffered']
    %12 = vsyncpa [#allocation6], 0
    %13 = vsyncpa [#allocation9], 0
    %14 = vsyncpa [#allocation7], 0
    %15 = vsyncpa [#allocation13], 0
    // Predicated region
    $region2: #{tpu_custom_call.1} parent=1 // pred_check
      _
    $region3: #{tpu_custom_call.1} parent=1 // pred_check_branch
      %17 = sbr.rel (0) target = $region5
    $region4: #{tpu_custom_call.1} parent=1 // pred_region
      %s19 = ssub.s32 1024, 1024
      %20 = vsyncadd [#allocation6], %s19
      %s21 = sshll.u32 [#allocation5], 4
      %s22 = int_to_ptr.vmem [resolvable:$true] %s21
      %27 = dma.hbm_to_vmem [thread:$0]  %s0, 1024, %s22, [#allocation6], 128, 128, 8
    $region5: #{tpu_custom_call.1} parent=1 // pred_fallthru
      _
    // Predicated region
    $region6: #{tpu_custom_call.1} parent=1 // pred_check
      _
    $region7: #{tpu_custom_call.1} parent=1 // pred_check_branch
      %29 = sbr.rel (0) target = $region9
    $region8: #{tpu_custom_call.1} parent=1 // pred_region
      %s31 = ssub.s32 256, 256
      %32 = vsyncadd [#allocation9], %s31
      %s33 = sshll.u32 [#allocation8], 4
      %s34 = int_to_ptr.vmem [resolvable:$true] %s33
      %39 = dma.hbm_to_vmem [thread:$0]  %s1, 256, %s34, [#allocation9], 128, 128, 8
    $region9: #{tpu_custom_call.1} parent=1 // pred_fallthru
      _
    // Predicated region
    $region10: #{tpu_custom_call.1} parent=1 // pred_check
      _
    $region11: #{tpu_custom_call.1} parent=1 // pred_check_branch
      %41 = sbr.rel (0) target = $region13
    $region12: #{tpu_custom_call.1} parent=1 // pred_region
      %s43 = ssub.s32 512, 512
      %44 = vsyncadd [#allocation9], %s43
      %s45 = sshll.u32 [#allocation10], 4
      %s46 = int_to_ptr.vmem [resolvable:$true] %s45
      %51 = dma.hbm_to_vmem [thread:$0]  %s2, 512, %s46, [#allocation9], 128, 128, 8
    $region13: #{tpu_custom_call.1} parent=1 // pred_fallthru
      _
    // Predicated region
    $region14: #{tpu_custom_call.1} parent=1 // pred_check
      _
    $region15: #{tpu_custom_call.1} parent=1 // pred_check_branch
      %53 = sbr.rel (0) target = $region17
    $region16: #{tpu_custom_call.1} parent=1 // pred_region
      _
    $region17: #{tpu_custom_call.1} parent=1 // pred_fallthru
      _
    // Predicated region
    $region18: #{tpu_custom_call.1} parent=1 // pred_check
      _
    $region19: #{tpu_custom_call.1} parent=1 // pred_check_branch
      %55 = sbr.rel (0) target = $region21
    $region20: #{tpu_custom_call.1} parent=1 // pred_region
      %56 = dma.done [#allocation6], 1024
    $region21: #{tpu_custom_call.1} parent=1 // pred_fallthru
      _
    // Predicated region
    $region22: #{tpu_custom_call.1} parent=1 // pred_check
      _
    $region23: #{tpu_custom_call.1} parent=1 // pred_check_branch
      %58 = sbr.rel (0) target = $region25
    $region24: #{tpu_custom_call.1} parent=1 // pred_region
      %59 = dma.done [#allocation9], 256
    $region25: #{tpu_custom_call.1} parent=1 // pred_fallthru
      _
    // Predicated region
    $region26: #{tpu_custom_call.1} parent=1 // pred_check
      _
    $region27: #{tpu_custom_call.1} parent=1 // pred_check_branch
      %61 = sbr.rel (0) target = $region29
    $region28: #{tpu_custom_call.1} parent=1 // pred_region
      %62 = dma.done [#allocation9], 512
    $region29: #{tpu_custom_call.1} parent=1 // pred_fallthru
      _
    %p63 = scmp.eq.s32.totalorder 0, 0
    // Predicated region
    $region30: #{tpu_custom_call.1} parent=1 // pred_check
      %p64 = pneg %p63
    $region31: #{tpu_custom_call.1} parent=1 // pred_check_branch
      %66 = sbr.rel (%p64) target = $region33
    $region32: #{tpu_custom_call.1} parent=1 // pred_region
      %vm67 = vcmask 261120
      %68 = vst.msk [vmem:[#allocation3] sm:$0xff] %vm67, 0.0
      %69 = vst.msk [vmem:[#allocation4] sm:$0xff] %vm67, 0.0
    $region33: #{tpu_custom_call.1} parent=1 // pred_fallthru
      _
    %v70 = vld [vmem:[#allocation5] sm:$0xff]
    %v71 = vld [vmem:[#allocation5 + $0x8] sm:$0xff]
    %v72 = vld [vmem:[#allocation5 + $0x10] sm:$0xff]
    %v73 = vld [vmem:[#allocation5 + $0x18] sm:$0xff]
    %v74 = vld [vmem:[#allocation5 + $0x20] sm:$0xff]
    %v75 = vld [vmem:[#allocation5 + $0x28] sm:$0xff]
    %v76 = vld [vmem:[#allocation5 + $0x30] sm:$0xff]
    %v77 = vld [vmem:[#allocation5 + $0x38] sm:$0xff]
    %v78 = vld [vmem:[#allocation8] sm:$0xff]
    %v79 = vld [vmem:[#allocation8 + $0x8] sm:$0xff]
    %v80 = vld [vmem:[%s3] sm:$0x1]
    %v82 = vlaneseq
    %v83 = vshrl.u32 %v82, 7
    %v84 = vsub.s32 0, %v83
    %v85 = vrot.slane %v80, %v84
    %vm87 = vcmask 130048
    %v89 = vsel %vm87, %v70, 0
    %v92 = vsel %vm87, %v71, 0
    %v95 = vsel %vm87, %v72, 0
    %v98 = vsel %vm87, %v73, 0
    %v101 = vsel %vm87, %v74, 0
    %v104 = vsel %vm87, %v75, 0
    %v107 = vsel %vm87, %v76, 0
    %v110 = vsel %vm87, %v77, 0
    %112 = vmatprep.subr.mxu0 0.0
    %113 = vmatpush1.msra.mxu0 %v78
    %114 = vmatprep.subr.mxu0 0.0
    %115 = vmatpush1.msra.mxu0 %v79
    %116 = vmatprep.subr.mxu0 0.0
    %117 = vmatpush1.msra.mxu0 0.0
    %118 = vmatprep.subr.mxu0 0.0
    %119 = vmatpush1.msra.mxu0 0.0
    %120 = vmatprep.subr.mxu0 0.0
    %121 = vmatpush1.msra.mxu0 0.0
    %122 = vmatprep.subr.mxu0 0.0
    %123 = vmatpush1.msra.mxu0 0.0
    %124 = vmatprep.subr.mxu0 0.0
    %125 = vmatpush1.msra.mxu0 0.0
    %126 = vmatprep.subr.mxu0 0.0
    %127 = vmatpush1.msra.mxu0 0.0
    %128 = vmatprep.subr.mxu0 0.0
    %129 = vmatpush1.msra.mxu0 0.0
    %130 = vmatprep.subr.mxu0 0.0
    %131 = vmatpush1.msra.mxu0 0.0
    %132 = vmatprep.subr.mxu0 0.0
    %133 = vmatpush1.msra.mxu0 0.0
    %134 = vmatprep.subr.mxu0 0.0
    %135 = vmatpush1.msra.mxu0 0.0
    %136 = vmatprep.subr.mxu0 0.0
    %137 = vmatpush1.msra.mxu0 0.0
    %138 = vmatprep.subr.mxu0 0.0
    %139 = vmatpush1.msra.mxu0 0.0
    %140 = vmatprep.subr.mxu0 0.0
    %141 = vmatpush1.msra.mxu0 0.0
    %142 = vmatprep.subr.mxu0 0.0
    %143 = vmatpush1.msra.mxu0 0.0
    %144 = vmatprep.subr.mxu0 0.0
    %145 = vmatpush1.msra.mxu0 0.0
    %146 = vmatprep.subr.mxu0 0.0
    %147 = vmatpush1.msra.mxu0 0.0
    %148 = vmatprep.subr.mxu0 0.0
    %149 = vmatpush1.msra.mxu0 0.0
    %150 = vmatprep.subr.mxu0 0.0
    %151 = vmatpush1.msra.mxu0 0.0
    %152 = vmatprep.subr.mxu0 0.0
    %153 = vmatpush1.msra.mxu0 0.0
    %154 = vmatprep.subr.mxu0 0.0
    %155 = vmatpush1.msra.mxu0 0.0
    %156 = vmatprep.subr.mxu0 0.0
    %157 = vmatpush1.msra.mxu0 0.0
    %158 = vmatprep.subr.mxu0 0.0
    %159 = vmatpush1.msra.mxu0 0.0
    %160 = vmatprep.subr.mxu0 0.0
    %161 = vmatpush1.msra.mxu0 0.0
    %162 = vmatprep.subr.mxu0 0.0
    %163 = vmatpush1.msra.mxu0 0.0
    %164 = vmatprep.subr.mxu0 0.0
    %165 = vmatpush1.msra.mxu0 0.0
    %166 = vmatprep.subr.mxu0 0.0
    %167 = vmatpush1.msra.mxu0 0.0
    %168 = vmatprep.subr.mxu0 0.0
    %169 = vmatpush1.msra.mxu0 0.0
    %170 = vmatprep.subr.mxu0 0.0
    %171 = vmatpush1.msra.mxu0 0.0
    %172 = vmatprep.subr.mxu0 0.0
    %173 = vmatpush1.msra.mxu0 0.0
    %174 = vmatprep.subr.mxu0 0.0
    %175 = vmatpush1.msra.mxu0 0.0
    %176 = vmatprep.mubr.f32.mxu0 0.0
    %177 = vmatmul.mubr.f32.gmra.mrb[0].mxu0 %v89
    %v178 = vpop.f32.mrb[0].mxu0
    %v179 = vadd.f32 %v85, %v178
    %v180 = vpop.f32.mrb[0].mxu0
    %181 = vmatprep.mubr.f32.mxu0 0.0
    %182 = vmatmul.mubr.f32.gmra.mrb[0].mxu0 %v92
    %v183 = vpop.f32.mrb[0].mxu0
    %v184 = vadd.f32 %v85, %v183
    %v185 = vpop.f32.mrb[0].mxu0
    %186 = vmatprep.mubr.f32.mxu0 0.0
    %187 = vmatmul.mubr.f32.gmra.mrb[0].mxu0 %v95
    %v188 = vpop.f32.mrb[0].mxu0
    %v189 = vadd.f32 %v85, %v188
    %v190 = vpop.f32.mrb[0].mxu0
    %191 = vmatprep.mubr.f32.mxu0 0.0
    %192 = vmatmul.mubr.f32.gmra.mrb[0].mxu0 %v98
    %v193 = vpop.f32.mrb[0].mxu0
    %v194 = vadd.f32 %v85, %v193
    %v195 = vpop.f32.mrb[0].mxu0
    %196 = vmatprep.mubr.f32.mxu0 0.0
    %197 = vmatmul.mubr.f32.gmra.mrb[0].mxu0 %v101
    %v198 = vpop.f32.mrb[0].mxu0
    %v199 = vadd.f32 %v85, %v198
    %v200 = vpop.f32.mrb[0].mxu0
    %201 = vmatprep.mubr.f32.mxu0 0.0
    %202 = vmatmul.mubr.f32.gmra.mrb[0].mxu0 %v104
    %v203 = vpop.f32.mrb[0].mxu0
    %v204 = vadd.f32 %v85, %v203
    %v205 = vpop.f32.mrb[0].mxu0
    %206 = vmatprep.mubr.f32.mxu0 0.0
    %207 = vmatmul.mubr.f32.gmra.mrb[0].mxu0 %v107
    %v208 = vpop.f32.mrb[0].mxu0
    %v209 = vadd.f32 %v85, %v208
    %v210 = vpop.f32.mrb[0].mxu0
    %211 = vmatprep.mubr.f32.mxu0 0.0
    %212 = vmatmul.mubr.f32.gmra.mrb[0].mxu0 %v110
    %v213 = vpop.f32.mrb[0].mxu0
    %v214 = vadd.f32 %v85, %v213
    %v215 = vpop.f32.mrb[0].mxu0
    %216 = vdwg.mxu0
    %217 = vst [vmem:[#allocation2] sm:$0xff] %v179
    %218 = vst [vmem:[#allocation2 + $0x8] sm:$0xff] %v184
    %219 = vst [vmem:[#allocation2 + $0x10] sm:$0xff] %v189
    %220 = vst [vmem:[#allocation2 + $0x18] sm:$0xff] %v194
    %221 = vst [vmem:[#allocation2 + $0x20] sm:$0xff] %v199
    %222 = vst [vmem:[#allocation2 + $0x28] sm:$0xff] %v204
    %223 = vst [vmem:[#allocation2 + $0x30] sm:$0xff] %v209
    %224 = vst [vmem:[#allocation2 + $0x38] sm:$0xff] %v214
    %v225 = vld [vmem:[#allocation10] sm:$0xff]
    %v226 = vld [vmem:[#allocation10 + $0x8] sm:$0xff]
    %v227 = vld [vmem:[#allocation10 + $0x10] sm:$0xff]
    %v228 = vld [vmem:[#allocation10 + $0x18] sm:$0xff]
    %v229 = vlaneseq
    %v230 = vand.u32 %v229, 127
    %vm231 = vcmp.ge.s32.totalorder %v230, 64
    %vm232 = vcmp.lt.s32.totalorder %v230, 96
    %vm233 = vmand %vm231, %vm232
    %v234 = vld [vmem:[#allocation3] sm:$0xff]
    %v235 = vld [vmem:[#allocation4] sm:$0xff]
    %v236 = vld [vmem:[#allocation2] sm:$0xff]
    %vm237 = vcmask 261120
    %v239 = vsel %vm237, %v234, 0
    %241 = vmatprep.subr.mxu0 0.0
    %242 = vmatpush1.msra.mxu0 %v225
    %243 = vmatprep.subr.mxu0 0.0
    %244 = vmatpush1.msra.mxu0 %v226
    %245 = vmatprep.subr.mxu0 0.0
    %246 = vmatpush1.msra.mxu0 %v227
    %247 = vmatprep.subr.mxu0 0.0
    %248 = vmatpush1.msra.mxu0 %v228
    %249 = vmatprep.subr.mxu0 0.0
    %250 = vmatpush1.msra.mxu0 0.0
    %251 = vmatprep.subr.mxu0 0.0
    %252 = vmatpush1.msra.mxu0 0.0
    %253 = vmatprep.subr.mxu0 0.0
    %254 = vmatpush1.msra.mxu0 0.0
    %255 = vmatprep.subr.mxu0 0.0
    %256 = vmatpush1.msra.mxu0 0.0
    %257 = vmatprep.subr.mxu0 0.0
    %258 = vmatpush1.msra.mxu0 0.0
    %259 = vmatprep.subr.mxu0 0.0
    %260 = vmatpush1.msra.mxu0 0.0
    %261 = vmatprep.subr.mxu0 0.0
    %262 = vmatpush1.msra.mxu0 0.0
    %263 = vmatprep.subr.mxu0 0.0
    %264 = vmatpush1.msra.mxu0 0.0
    %265 = vmatprep.subr.mxu0 0.0
    %266 = vmatpush1.msra.mxu0 0.0
    %267 = vmatprep.subr.mxu0 0.0
    %268 = vmatpush1.msra.mxu0 0.0
    %269 = vmatprep.subr.mxu0 0.0
    %270 = vmatpush1.msra.mxu0 0.0
    %271 = vmatprep.subr.mxu0 0.0
    %272 = vmatpush1.msra.mxu0 0.0
    %273 = vmatprep.subr.mxu0 0.0
    %274 = vmatpush1.msra.mxu0 0.0
    %275 = vmatprep.subr.mxu0 0.0
    %276 = vmatpush1.msra.mxu0 0.0
    %277 = vmatprep.subr.mxu0 0.0
    %278 = vmatpush1.msra.mxu0 0.0
    %279 = vmatprep.subr.mxu0 0.0
    %280 = vmatpush1.msra.mxu0 0.0
    %281 = vmatprep.subr.mxu0 0.0
    %282 = vmatpush1.msra.mxu0 0.0
    %283 = vmatprep.subr.mxu0 0.0
    %284 = vmatpush1.msra.mxu0 0.0
    %285 = vmatprep.subr.mxu0 0.0
    %286 = vmatpush1.msra.mxu0 0.0
    %287 = vmatprep.subr.mxu0 0.0
    %288 = vmatpush1.msra.mxu0 0.0
    %289 = vmatprep.subr.mxu0 0.0
    %290 = vmatpush1.msra.mxu0 0.0
    %291 = vmatprep.subr.mxu0 0.0
    %292 = vmatpush1.msra.mxu0 0.0
    %293 = vmatprep.subr.mxu0 0.0
    %294 = vmatpush1.msra.mxu0 0.0
    %295 = vmatprep.subr.mxu0 0.0
    %296 = vmatpush1.msra.mxu0 0.0
    %297 = vmatprep.subr.mxu0 0.0
    %298 = vmatpush1.msra.mxu0 0.0
    %299 = vmatprep.subr.mxu0 0.0
    %300 = vmatpush1.msra.mxu0 0.0
    %301 = vmatprep.subr.mxu0 0.0
    %302 = vmatpush1.msra.mxu0 0.0
    %303 = vmatprep.subr.mxu0 0.0
    %304 = vmatpush1.msra.mxu0 0.0
    %305 = vmatprep.mubr.f32.mxu0 0.0
    %306 = vmatmul.mubr.f32.gmra.mrb[0].mxu0 %v239
    %v307 = vpop.f32.mrb[0].mxu0
    %v308 = vadd.f32 0.0, %v307
    %v309 = vpop.f32.mrb[0].mxu0
    %310 = vdwg.mxu0
    %v311 = vadd.f32 %v236, %v308
    %v312 = vtanh.pop %v311
    %v313 = vxor.u32 %v311, 2147483648
    %v314 = vmul.f32 %v313, 1.442695
    %v315 = vpow.pop %v314
    %v316 = vadd.f32 %v315, 1.0
    %v317 = vrcp.pop %v316
    %v318 = vmul.f32 1.0, %v317
    %v319 = vsel %vm233, %v312, %v318
    %321 = vrot.lane.b32.xlu0 %v235, 32
    %v322 = vpop.permute.xlu0 %321
    %v324 = vmul.f32 %v319, %v322
    %326 = vrot.lane.b32.xlu0 %v319, 64
    %v327 = vpop.permute.xlu0 %326
    %v329 = vmul.f32 %v319, %v327
    %331 = vrot.lane.b32.xlu0 %v329, 32
    %v332 = vpop.permute.xlu0 %331
    %v334 = vadd.f32 %v324, %v332
    %v335 = vtanh.pop %v334
    %337 = vrot.lane.b32.xlu0 %v335, 64
    %v338 = vpop.permute.xlu0 %337
    %v340 = vmul.f32 %v319, %v338
    %342 = vrot.lane.b32.xlu0 %v340, 32
    %v343 = vpop.permute.xlu0 %342
    %345 = vst.msk [vmem:[#allocation11] sm:$0xff] %vm237, %v343
    %s346 = scalar_lea.vmem [#allocation2], 8
    %v347 = vld [vmem:[%s346] sm:$0xff]
    %v348 = vsel %vm237, %v343, 0
    %350 = vmatprep.subr.mxu0 0.0
    %351 = vmatpush1.msra.mxu0 %v225
    %352 = vmatprep.subr.mxu0 0.0
    %353 = vmatpush1.msra.mxu0 %v226
    %354 = vmatprep.subr.mxu0 0.0
    %355 = vmatpush1.msra.mxu0 %v227
    %356 = vmatprep.subr.mxu0 0.0
    %357 = vmatpush1.msra.mxu0 %v228
    %358 = vmatprep.subr.mxu0 0.0
    %359 = vmatpush1.msra.mxu0 0.0
    %360 = vmatprep.subr.mxu0 0.0
    %361 = vmatpush1.msra.mxu0 0.0
    %362 = vmatprep.subr.mxu0 0.0
    %363 = vmatpush1.msra.mxu0 0.0
    %364 = vmatprep.subr.mxu0 0.0
    %365 = vmatpush1.msra.mxu0 0.0
    %366 = vmatprep.subr.mxu0 0.0
    %367 = vmatpush1.msra.mxu0 0.0
    %368 = vmatprep.subr.mxu0 0.0
    %369 = vmatpush1.msra.mxu0 0.0
    %370 = vmatprep.subr.mxu0 0.0
    %371 = vmatpush1.msra.mxu0 0.0
    %372 = vmatprep.subr.mxu0 0.0
    %373 = vmatpush1.msra.mxu0 0.0
    %374 = vmatprep.subr.mxu0 0.0
    %375 = vmatpush1.msra.mxu0 0.0
    %376 = vmatprep.subr.mxu0 0.0
    %377 = vmatpush1.msra.mxu0 0.0
    %378 = vmatprep.subr.mxu0 0.0
    %379 = vmatpush1.msra.mxu0 0.0
    %380 = vmatprep.subr.mxu0 0.0
    %381 = vmatpush1.msra.mxu0 0.0
    %382 = vmatprep.subr.mxu0 0.0
    %383 = vmatpush1.msra.mxu0 0.0
    %384 = vmatprep.subr.mxu0 0.0
    %385 = vmatpush1.msra.mxu0 0.0
    %386 = vmatprep.subr.mxu0 0.0
    %387 = vmatpush1.msra.mxu0 0.0
    %388 = vmatprep.subr.mxu0 0.0
    %389 = vmatpush1.msra.mxu0 0.0
    %390 = vmatprep.subr.mxu0 0.0
    %391 = vmatpush1.msra.mxu0 0.0
    %392 = vmatprep.subr.mxu0 0.0
    %393 = vmatpush1.msra.mxu0 0.0
    %394 = vmatprep.subr.mxu0 0.0
    %395 = vmatpush1.msra.mxu0 0.0
    %396 = vmatprep.subr.mxu0 0.0
    %397 = vmatpush1.msra.mxu0 0.0
    %398 = vmatprep.subr.mxu0 0.0
    %399 = vmatpush1.msra.mxu0 0.0
    %400 = vmatprep.subr.mxu0 0.0
    %401 = vmatpush1.msra.mxu0 0.0
    %402 = vmatprep.subr.mxu0 0.0
    %403 = vmatpush1.msra.mxu0 0.0
    %404 = vmatprep.subr.mxu0 0.0
    %405 = vmatpush1.msra.mxu0 0.0
    %406 = vmatprep.subr.mxu0 0.0
    %407 = vmatpush1.msra.mxu0 0.0
    %408 = vmatprep.subr.mxu0 0.0
    %409 = vmatpush1.msra.mxu0 0.0
    %410 = vmatprep.subr.mxu0 0.0
    %411 = vmatpush1.msra.mxu0 0.0
    %412 = vmatprep.subr.mxu0 0.0
    %413 = vmatpush1.msra.mxu0 0.0
    %414 = vmatprep.mubr.f32.mxu0 0.0
    %415 = vmatmul.mubr.f32.gmra.mrb[0].mxu0 %v348
    %v416 = vpop.f32.mrb[0].mxu0
    %v417 = vadd.f32 0.0, %v416
    %v418 = vpop.f32.mrb[0].mxu0
    %419 = vdwg.mxu0
    %v420 = vadd.f32 %v347, %v417
    %v421 = vtanh.pop %v420
    %v422 = vxor.u32 %v420, 2147483648
    %v423 = vmul.f32 %v422, 1.442695
    %v424 = vpow.pop %v423
    %v425 = vadd.f32 %v424, 1.0
    %v426 = vrcp.pop %v425
    %v427 = vmul.f32 1.0, %v426
    %v428 = vsel %vm233, %v421, %v427
    %v429 = vmul.f32 %v428, %v334
    %431 = vrot.lane.b32.xlu0 %v428, 64
    %v432 = vpop.permute.xlu0 %431
    %v434 = vmul.f32 %v428, %v432
    %436 = vrot.lane.b32.xlu0 %v434, 32
    %v437 = vpop.permute.xlu0 %436
    %v439 = vadd.f32 %v429, %v437
    %v440 = vtanh.pop %v439
    %442 = vrot.lane.b32.xlu0 %v440, 64
    %v443 = vpop.permute.xlu0 %442
    %v445 = vmul.f32 %v428, %v443
    %447 = vrot.lane.b32.xlu0 %v445, 64
    %v448 = vpop.permute.xlu0 %447
    %vm450 = vcmask 523520
    %451 = vst.msk [vmem:[#allocation11] sm:$0xff] %vm450, %v448
    %s452 = scalar_lea.vmem [#allocation2], 16
    %v453 = vld [vmem:[%s452] sm:$0xff]
    %454 = vrot.lane.b32.xlu0 %v445, 32
    %v455 = vpop.permute.xlu0 %454
    %v456 = vsel %vm237, %v455, 0
    %458 = vmatprep.subr.mxu0 0.0
    %459 = vmatpush1.msra.mxu0 %v225
    %460 = vmatprep.subr.mxu0 0.0
    %461 = vmatpush1.msra.mxu0 %v226
    %462 = vmatprep.subr.mxu0 0.0
    %463 = vmatpush1.msra.mxu0 %v227
    %464 = vmatprep.subr.mxu0 0.0
    %465 = vmatpush1.msra.mxu0 %v228
    %466 = vmatprep.subr.mxu0 0.0
    %467 = vmatpush1.msra.mxu0 0.0
    %468 = vmatprep.subr.mxu0 0.0
    %469 = vmatpush1.msra.mxu0 0.0
    %470 = vmatprep.subr.mxu0 0.0
    %471 = vmatpush1.msra.mxu0 0.0
    %472 = vmatprep.subr.mxu0 0.0
    %473 = vmatpush1.msra.mxu0 0.0
    %474 = vmatprep.subr.mxu0 0.0
    %475 = vmatpush1.msra.mxu0 0.0
    %476 = vmatprep.subr.mxu0 0.0
    %477 = vmatpush1.msra.mxu0 0.0
    %478 = vmatprep.subr.mxu0 0.0
    %479 = vmatpush1.msra.mxu0 0.0
    %480 = vmatprep.subr.mxu0 0.0
    %481 = vmatpush1.msra.mxu0 0.0
    %482 = vmatprep.subr.mxu0 0.0
    %483 = vmatpush1.msra.mxu0 0.0
    %484 = vmatprep.subr.mxu0 0.0
    %485 = vmatpush1.msra.mxu0 0.0
    %486 = vmatprep.subr.mxu0 0.0
    %487 = vmatpush1.msra.mxu0 0.0
    %488 = vmatprep.subr.mxu0 0.0
    %489 = vmatpush1.msra.mxu0 0.0
    %490 = vmatprep.subr.mxu0 0.0
    %491 = vmatpush1.msra.mxu0 0.0
    %492 = vmatprep.subr.mxu0 0.0
    %493 = vmatpush1.msra.mxu0 0.0
    %494 = vmatprep.subr.mxu0 0.0
    %495 = vmatpush1.msra.mxu0 0.0
    %496 = vmatprep.subr.mxu0 0.0
    %497 = vmatpush1.msra.mxu0 0.0
    %498 = vmatprep.subr.mxu0 0.0
    %499 = vmatpush1.msra.mxu0 0.0
    %500 = vmatprep.subr.mxu0 0.0
    %501 = vmatpush1.msra.mxu0 0.0
    %502 = vmatprep.subr.mxu0 0.0
    %503 = vmatpush1.msra.mxu0 0.0
    %504 = vmatprep.subr.mxu0 0.0
    %505 = vmatpush1.msra.mxu0 0.0
    %506 = vmatprep.subr.mxu0 0.0
    %507 = vmatpush1.msra.mxu0 0.0
    %508 = vmatprep.subr.mxu0 0.0
    %509 = vmatpush1.msra.mxu0 0.0
    %510 = vmatprep.subr.mxu0 0.0
    %511 = vmatpush1.msra.mxu0 0.0
    %512 = vmatprep.subr.mxu0 0.0
    %513 = vmatpush1.msra.mxu0 0.0
    %514 = vmatprep.subr.mxu0 0.0
    %515 = vmatpush1.msra.mxu0 0.0
    %516 = vmatprep.subr.mxu0 0.0
    %517 = vmatpush1.msra.mxu0 0.0
    %518 = vmatprep.subr.mxu0 0.0
    %519 = vmatpush1.msra.mxu0 0.0
    %520 = vmatprep.subr.mxu0 0.0
    %521 = vmatpush1.msra.mxu0 0.0
    %522 = vmatprep.mubr.f32.mxu0 0.0
    %523 = vmatmul.mubr.f32.gmra.mrb[0].mxu0 %v456
    %v524 = vpop.f32.mrb[0].mxu0
    %v525 = vadd.f32 0.0, %v524
    %v526 = vpop.f32.mrb[0].mxu0
    %527 = vdwg.mxu0
    %v528 = vadd.f32 %v453, %v525
    %v529 = vtanh.pop %v528
    %v530 = vxor.u32 %v528, 2147483648
    %v531 = vmul.f32 %v530, 1.442695
    %v532 = vpow.pop %v531
    %v533 = vadd.f32 %v532, 1.0
    %v534 = vrcp.pop %v533
    %v535 = vmul.f32 1.0, %v534
    %v536 = vsel %vm233, %v529, %v535
    %v537 = vmul.f32 %v536, %v439
    %539 = vrot.lane.b32.xlu0 %v536, 64
    %v540 = vpop.permute.xlu0 %539
    %v542 = vmul.f32 %v536, %v540
    %544 = vrot.lane.b32.xlu0 %v542, 32
    %v545 = vpop.permute.xlu0 %544
    %v547 = vadd.f32 %v537, %v545
    %v548 = vtanh.pop %v547
    %550 = vrot.lane.b32.xlu0 %v548, 64
    %v551 = vpop.permute.xlu0 %550
    %v553 = vmul.f32 %v536, %v551
    %555 = vrot.lane.b32.xlu0 %v553, 96
    %v556 = vpop.permute.xlu0 %555
    %vm558 = vcmask 785920
    %559 = vst.msk [vmem:[#allocation11] sm:$0xff] %vm558, %v556
    %s560 = scalar_lea.vmem [#allocation2], 24
    %v561 = vld [vmem:[%s560] sm:$0xff]
    %562 = vrot.lane.b32.xlu0 %v553, 32
    %v563 = vpop.permute.xlu0 %562
    %v564 = vsel %vm237, %v563, 0
    %566 = vmatprep.subr.mxu0 0.0
    %567 = vmatpush1.msra.mxu0 %v225
    %568 = vmatprep.subr.mxu0 0.0
    %569 = vmatpush1.msra.mxu0 %v226
    %570 = vmatprep.subr.mxu0 0.0
    %571 = vmatpush1.msra.mxu0 %v227
    %572 = vmatprep.subr.mxu0 0.0
    %573 = vmatpush1.msra.mxu0 %v228
    %574 = vmatprep.subr.mxu0 0.0
    %575 = vmatpush1.msra.mxu0 0.0
    %576 = vmatprep.subr.mxu0 0.0
    %577 = vmatpush1.msra.mxu0 0.0
    %578 = vmatprep.subr.mxu0 0.0
    %579 = vmatpush1.msra.mxu0 0.0
    %580 = vmatprep.subr.mxu0 0.0
    %581 = vmatpush1.msra.mxu0 0.0
    %582 = vmatprep.subr.mxu0 0.0
    %583 = vmatpush1.msra.mxu0 0.0
    %584 = vmatprep.subr.mxu0 0.0
    %585 = vmatpush1.msra.mxu0 0.0
    %586 = vmatprep.subr.mxu0 0.0
    %587 = vmatpush1.msra.mxu0 0.0
    %588 = vmatprep.subr.mxu0 0.0
    %589 = vmatpush1.msra.mxu0 0.0
    %590 = vmatprep.subr.mxu0 0.0
    %591 = vmatpush1.msra.mxu0 0.0
    %592 = vmatprep.subr.mxu0 0.0
    %593 = vmatpush1.msra.mxu0 0.0
    %594 = vmatprep.subr.mxu0 0.0
    %595 = vmatpush1.msra.mxu0 0.0
    %596 = vmatprep.subr.mxu0 0.0
    %597 = vmatpush1.msra.mxu0 0.0
    %598 = vmatprep.subr.mxu0 0.0
    %599 = vmatpush1.msra.mxu0 0.0
    %600 = vmatprep.subr.mxu0 0.0
    %601 = vmatpush1.msra.mxu0 0.0
    %602 = vmatprep.subr.mxu0 0.0
    %603 = vmatpush1.msra.mxu0 0.0
    %604 = vmatprep.subr.mxu0 0.0
    %605 = vmatpush1.msra.mxu0 0.0
    %606 = vmatprep.subr.mxu0 0.0
    %607 = vmatpush1.msra.mxu0 0.0
    %608 = vmatprep.subr.mxu0 0.0
    %609 = vmatpush1.msra.mxu0 0.0
    %610 = vmatprep.subr.mxu0 0.0
    %611 = vmatpush1.msra.mxu0 0.0
    %612 = vmatprep.subr.mxu0 0.0
    %613 = vmatpush1.msra.mxu0 0.0
    %614 = vmatprep.subr.mxu0 0.0
    %615 = vmatpush1.msra.mxu0 0.0
    %616 = vmatprep.subr.mxu0 0.0
    %617 = vmatpush1.msra.mxu0 0.0
    %618 = vmatprep.subr.mxu0 0.0
    %619 = vmatpush1.msra.mxu0 0.0
    %620 = vmatprep.subr.mxu0 0.0
    %621 = vmatpush1.msra.mxu0 0.0
    %622 = vmatprep.subr.mxu0 0.0
    %623 = vmatpush1.msra.mxu0 0.0
    %624 = vmatprep.subr.mxu0 0.0
    %625 = vmatpush1.msra.mxu0 0.0
    %626 = vmatprep.subr.mxu0 0.0
    %627 = vmatpush1.msra.mxu0 0.0
    %628 = vmatprep.subr.mxu0 0.0
    %629 = vmatpush1.msra.mxu0 0.0
    %630 = vmatprep.mubr.f32.mxu0 0.0
    %631 = vmatmul.mubr.f32.gmra.mrb[0].mxu0 %v564
    %v632 = vpop.f32.mrb[0].mxu0
    %v633 = vadd.f32 0.0, %v632
    %v634 = vpop.f32.mrb[0].mxu0
    %635 = vdwg.mxu0
    %v636 = vadd.f32 %v561, %v633
    %v637 = vtanh.pop %v636
    %v638 = vxor.u32 %v636, 2147483648
    %v639 = vmul.f32 %v638, 1.442695
    %v640 = vpow.pop %v639
    %v641 = vadd.f32 %v640, 1.0
    %v642 = vrcp.pop %v641
    %v643 = vmul.f32 1.0, %v642
    %v644 = vsel %vm233, %v637, %v643
    %v645 = vmul.f32 %v644, %v547
    %647 = vrot.lane.b32.xlu0 %v644, 64
    %v648 = vpop.permute.xlu0 %647
    %v650 = vmul.f32 %v644, %v648
    %652 = vrot.lane.b32.xlu0 %v650, 32
    %v653 = vpop.permute.xlu0 %652
    %v655 = vadd.f32 %v645, %v653
    %v656 = vtanh.pop %v655
    %658 = vrot.lane.b32.xlu0 %v656, 64
    %v659 = vpop.permute.xlu0 %658
    %v661 = vmul.f32 %v644, %v659
    %vm662 = vcmask 1048320
    %663 = vst.msk [vmem:[#allocation11] sm:$0xff] %vm662, %v661
    %s664 = scalar_lea.vmem [#allocation2], 32
    %v665 = vld [vmem:[%s664] sm:$0xff]
    %667 = vrot.lane.b32.xlu0 %v661, 32
    %v668 = vpop.permute.xlu0 %667
    %v669 = vsel %vm237, %v668, 0
    %671 = vmatprep.subr.mxu0 0.0
    %672 = vmatpush1.msra.mxu0 %v225
    %673 = vmatprep.subr.mxu0 0.0
    %674 = vmatpush1.msra.mxu0 %v226
    %675 = vmatprep.subr.mxu0 0.0
    %676 = vmatpush1.msra.mxu0 %v227
    %677 = vmatprep.subr.mxu0 0.0
    %678 = vmatpush1.msra.mxu0 %v228
    %679 = vmatprep.subr.mxu0 0.0
    %680 = vmatpush1.msra.mxu0 0.0
    %681 = vmatprep.subr.mxu0 0.0
    %682 = vmatpush1.msra.mxu0 0.0
    %683 = vmatprep.subr.mxu0 0.0
    %684 = vmatpush1.msra.mxu0 0.0
    %685 = vmatprep.subr.mxu0 0.0
    %686 = vmatpush1.msra.mxu0 0.0
    %687 = vmatprep.subr.mxu0 0.0
    %688 = vmatpush1.msra.mxu0 0.0
    %689 = vmatprep.subr.mxu0 0.0
    %690 = vmatpush1.msra.mxu0 0.0
    %691 = vmatprep.subr.mxu0 0.0
    %692 = vmatpush1.msra.mxu0 0.0
    %693 = vmatprep.subr.mxu0 0.0
    %694 = vmatpush1.msra.mxu0 0.0
    %695 = vmatprep.subr.mxu0 0.0
    %696 = vmatpush1.msra.mxu0 0.0
    %697 = vmatprep.subr.mxu0 0.0
    %698 = vmatpush1.msra.mxu0 0.0
    %699 = vmatprep.subr.mxu0 0.0
    %700 = vmatpush1.msra.mxu0 0.0
    %701 = vmatprep.subr.mxu0 0.0
    %702 = vmatpush1.msra.mxu0 0.0
    %703 = vmatprep.subr.mxu0 0.0
    %704 = vmatpush1.msra.mxu0 0.0
    %705 = vmatprep.subr.mxu0 0.0
    %706 = vmatpush1.msra.mxu0 0.0
    %707 = vmatprep.subr.mxu0 0.0
    %708 = vmatpush1.msra.mxu0 0.0
    %709 = vmatprep.subr.mxu0 0.0
    %710 = vmatpush1.msra.mxu0 0.0
    %711 = vmatprep.subr.mxu0 0.0
    %712 = vmatpush1.msra.mxu0 0.0
    %713 = vmatprep.subr.mxu0 0.0
    %714 = vmatpush1.msra.mxu0 0.0
    %715 = vmatprep.subr.mxu0 0.0
    %716 = vmatpush1.msra.mxu0 0.0
    %717 = vmatprep.subr.mxu0 0.0
    %718 = vmatpush1.msra.mxu0 0.0
    %719 = vmatprep.subr.mxu0 0.0
    %720 = vmatpush1.msra.mxu0 0.0
    %721 = vmatprep.subr.mxu0 0.0
    %722 = vmatpush1.msra.mxu0 0.0
    %723 = vmatprep.subr.mxu0 0.0
    %724 = vmatpush1.msra.mxu0 0.0
    %725 = vmatprep.subr.mxu0 0.0
    %726 = vmatpush1.msra.mxu0 0.0
    %727 = vmatprep.subr.mxu0 0.0
    %728 = vmatpush1.msra.mxu0 0.0
    %729 = vmatprep.subr.mxu0 0.0
    %730 = vmatpush1.msra.mxu0 0.0
    %731 = vmatprep.subr.mxu0 0.0
    %732 = vmatpush1.msra.mxu0 0.0
    %733 = vmatprep.subr.mxu0 0.0
    %734 = vmatpush1.msra.mxu0 0.0
    %735 = vmatprep.mubr.f32.mxu0 0.0
    %736 = vmatmul.mubr.f32.gmra.mrb[0].mxu0 %v669
    %v737 = vpop.f32.mrb[0].mxu0
    %v738 = vadd.f32 0.0, %v737
    %v739 = vpop.f32.mrb[0].mxu0
    %740 = vdwg.mxu0
    %v741 = vadd.f32 %v665, %v738
    %v742 = vtanh.pop %v741
    %v743 = vxor.u32 %v741, 2147483648
    %v744 = vmul.f32 %v743, 1.442695
    %v745 = vpow.pop %v744
    %v746 = vadd.f32 %v745, 1.0
    %v747 = vrcp.pop %v746
    %v748 = vmul.f32 1.0, %v747
    %v749 = vsel %vm233, %v742, %v748
    %v750 = vmul.f32 %v749, %v655
    %752 = vrot.lane.b32.xlu0 %v749, 64
    %v753 = vpop.permute.xlu0 %752
    %v755 = vmul.f32 %v749, %v753
    %757 = vrot.lane.b32.xlu0 %v755, 32
    %v758 = vpop.permute.xlu0 %757
    %v760 = vadd.f32 %v750, %v758
    %v761 = vtanh.pop %v760
    %763 = vrot.lane.b32.xlu0 %v761, 64
    %v764 = vpop.permute.xlu0 %763
    %v766 = vmul.f32 %v749, %v764
    %768 = vrot.lane.b32.xlu0 %v766, 32
    %v769 = vpop.permute.xlu0 %768
    %771 = vst.msk [vmem:[#allocation11 + $0x8] sm:$0xff] %vm237, %v769
    %s772 = scalar_lea.vmem [#allocation2], 40
    %v773 = vld [vmem:[%s772] sm:$0xff]
    %v774 = vsel %vm237, %v769, 0
    %776 = vmatprep.subr.mxu0 0.0
    %777 = vmatpush1.msra.mxu0 %v225
    %778 = vmatprep.subr.mxu0 0.0
    %779 = vmatpush1.msra.mxu0 %v226
    %780 = vmatprep.subr.mxu0 0.0
    %781 = vmatpush1.msra.mxu0 %v227
    %782 = vmatprep.subr.mxu0 0.0
    %783 = vmatpush1.msra.mxu0 %v228
    %784 = vmatprep.subr.mxu0 0.0
    %785 = vmatpush1.msra.mxu0 0.0
    %786 = vmatprep.subr.mxu0 0.0
    %787 = vmatpush1.msra.mxu0 0.0
    %788 = vmatprep.subr.mxu0 0.0
    %789 = vmatpush1.msra.mxu0 0.0
    %790 = vmatprep.subr.mxu0 0.0
    %791 = vmatpush1.msra.mxu0 0.0
    %792 = vmatprep.subr.mxu0 0.0
    %793 = vmatpush1.msra.mxu0 0.0
    %794 = vmatprep.subr.mxu0 0.0
    %795 = vmatpush1.msra.mxu0 0.0
    %796 = vmatprep.subr.mxu0 0.0
    %797 = vmatpush1.msra.mxu0 0.0
    %798 = vmatprep.subr.mxu0 0.0
    %799 = vmatpush1.msra.mxu0 0.0
    %800 = vmatprep.subr.mxu0 0.0
    %801 = vmatpush1.msra.mxu0 0.0
    %802 = vmatprep.subr.mxu0 0.0
    %803 = vmatpush1.msra.mxu0 0.0
    %804 = vmatprep.subr.mxu0 0.0
    %805 = vmatpush1.msra.mxu0 0.0
    %806 = vmatprep.subr.mxu0 0.0
    %807 = vmatpush1.msra.mxu0 0.0
    %808 = vmatprep.subr.mxu0 0.0
    %809 = vmatpush1.msra.mxu0 0.0
    %810 = vmatprep.subr.mxu0 0.0
    %811 = vmatpush1.msra.mxu0 0.0
    %812 = vmatprep.subr.mxu0 0.0
    %813 = vmatpush1.msra.mxu0 0.0
    %814 = vmatprep.subr.mxu0 0.0
    %815 = vmatpush1.msra.mxu0 0.0
    %816 = vmatprep.subr.mxu0 0.0
    %817 = vmatpush1.msra.mxu0 0.0
    %818 = vmatprep.subr.mxu0 0.0
    %819 = vmatpush1.msra.mxu0 0.0
    %820 = vmatprep.subr.mxu0 0.0
    %821 = vmatpush1.msra.mxu0 0.0
    %822 = vmatprep.subr.mxu0 0.0
    %823 = vmatpush1.msra.mxu0 0.0
    %824 = vmatprep.subr.mxu0 0.0
    %825 = vmatpush1.msra.mxu0 0.0
    %826 = vmatprep.subr.mxu0 0.0
    %827 = vmatpush1.msra.mxu0 0.0
    %828 = vmatprep.subr.mxu0 0.0
    %829 = vmatpush1.msra.mxu0 0.0
    %830 = vmatprep.subr.mxu0 0.0
    %831 = vmatpush1.msra.mxu0 0.0
    %832 = vmatprep.subr.mxu0 0.0
    %833 = vmatpush1.msra.mxu0 0.0
    %834 = vmatprep.subr.mxu0 0.0
    %835 = vmatpush1.msra.mxu0 0.0
    %836 = vmatprep.subr.mxu0 0.0
    %837 = vmatpush1.msra.mxu0 0.0
    %838 = vmatprep.subr.mxu0 0.0
    %839 = vmatpush1.msra.mxu0 0.0
    %840 = vmatprep.mubr.f32.mxu0 0.0
    %841 = vmatmul.mubr.f32.gmra.mrb[0].mxu0 %v774
    %v842 = vpop.f32.mrb[0].mxu0
    %v843 = vadd.f32 0.0, %v842
    %v844 = vpop.f32.mrb[0].mxu0
    %845 = vdwg.mxu0
    %v846 = vadd.f32 %v773, %v843
    %v847 = vtanh.pop %v846
    %v848 = vxor.u32 %v846, 2147483648
    %v849 = vmul.f32 %v848, 1.442695
    %v850 = vpow.pop %v849
    %v851 = vadd.f32 %v850, 1.0
    %v852 = vrcp.pop %v851
    %v853 = vmul.f32 1.0, %v852
    %v854 = vsel %vm233, %v847, %v853
    %v855 = vmul.f32 %v854, %v760
    %857 = vrot.lane.b32.xlu0 %v854, 64
    %v858 = vpop.permute.xlu0 %857
    %v860 = vmul.f32 %v854, %v858
    %862 = vrot.lane.b32.xlu0 %v860, 32
    %v863 = vpop.permute.xlu0 %862
    %v865 = vadd.f32 %v855, %v863
    %v866 = vtanh.pop %v865
    %868 = vrot.lane.b32.xlu0 %v866, 64
    %v869 = vpop.permute.xlu0 %868
    %v871 = vmul.f32 %v854, %v869
    %873 = vrot.lane.b32.xlu0 %v871, 64
    %v874 = vpop.permute.xlu0 %873
    %876 = vst.msk [vmem:[#allocation11 + $0x8] sm:$0xff] %vm450, %v874
    %s877 = scalar_lea.vmem [#allocation2], 48
    %v878 = vld [vmem:[%s877] sm:$0xff]
    %879 = vrot.lane.b32.xlu0 %v871, 32
    %v880 = vpop.permute.xlu0 %879
    %v881 = vsel %vm237, %v880, 0
    %883 = vmatprep.subr.mxu0 0.0
    %884 = vmatpush1.msra.mxu0 %v225
    %885 = vmatprep.subr.mxu0 0.0
    %886 = vmatpush1.msra.mxu0 %v226
    %887 = vmatprep.subr.mxu0 0.0
    %888 = vmatpush1.msra.mxu0 %v227
    %889 = vmatprep.subr.mxu0 0.0
    %890 = vmatpush1.msra.mxu0 %v228
    %891 = vmatprep.subr.mxu0 0.0
    %892 = vmatpush1.msra.mxu0 0.0
    %893 = vmatprep.subr.mxu0 0.0
    %894 = vmatpush1.msra.mxu0 0.0
    %895 = vmatprep.subr.mxu0 0.0
    %896 = vmatpush1.msra.mxu0 0.0
    %897 = vmatprep.subr.mxu0 0.0
    %898 = vmatpush1.msra.mxu0 0.0
    %899 = vmatprep.subr.mxu0 0.0
    %900 = vmatpush1.msra.mxu0 0.0
    %901 = vmatprep.subr.mxu0 0.0
    %902 = vmatpush1.msra.mxu0 0.0
    %903 = vmatprep.subr.mxu0 0.0
    %904 = vmatpush1.msra.mxu0 0.0
    %905 = vmatprep.subr.mxu0 0.0
    %906 = vmatpush1.msra.mxu0 0.0
    %907 = vmatprep.subr.mxu0 0.0
    %908 = vmatpush1.msra.mxu0 0.0
    %909 = vmatprep.subr.mxu0 0.0
    %910 = vmatpush1.msra.mxu0 0.0
    %911 = vmatprep.subr.mxu0 0.0
    %912 = vmatpush1.msra.mxu0 0.0
    %913 = vmatprep.subr.mxu0 0.0
    %914 = vmatpush1.msra.mxu0 0.0
    %915 = vmatprep.subr.mxu0 0.0
    %916 = vmatpush1.msra.mxu0 0.0
    %917 = vmatprep.subr.mxu0 0.0
    %918 = vmatpush1.msra.mxu0 0.0
    %919 = vmatprep.subr.mxu0 0.0
    %920 = vmatpush1.msra.mxu0 0.0
    %921 = vmatprep.subr.mxu0 0.0
    %922 = vmatpush1.msra.mxu0 0.0
    %923 = vmatprep.subr.mxu0 0.0
    %924 = vmatpush1.msra.mxu0 0.0
    %925 = vmatprep.subr.mxu0 0.0
    %926 = vmatpush1.msra.mxu0 0.0
    %927 = vmatprep.subr.mxu0 0.0
    %928 = vmatpush1.msra.mxu0 0.0
    %929 = vmatprep.subr.mxu0 0.0
    %930 = vmatpush1.msra.mxu0 0.0
    %931 = vmatprep.subr.mxu0 0.0
    %932 = vmatpush1.msra.mxu0 0.0
    %933 = vmatprep.subr.mxu0 0.0
    %934 = vmatpush1.msra.mxu0 0.0
    %935 = vmatprep.subr.mxu0 0.0
    %936 = vmatpush1.msra.mxu0 0.0
    %937 = vmatprep.subr.mxu0 0.0
    %938 = vmatpush1.msra.mxu0 0.0
    %939 = vmatprep.subr.mxu0 0.0
    %940 = vmatpush1.msra.mxu0 0.0
    %941 = vmatprep.subr.mxu0 0.0
    %942 = vmatpush1.msra.mxu0 0.0
    %943 = vmatprep.subr.mxu0 0.0
    %944 = vmatpush1.msra.mxu0 0.0
    %945 = vmatprep.subr.mxu0 0.0
    %946 = vmatpush1.msra.mxu0 0.0
    %947 = vmatprep.mubr.f32.mxu0 0.0
    %948 = vmatmul.mubr.f32.gmra.mrb[0].mxu0 %v881
    %v949 = vpop.f32.mrb[0].mxu0
    %v950 = vadd.f32 0.0, %v949
    %v951 = vpop.f32.mrb[0].mxu0
    %952 = vdwg.mxu0
    %v953 = vadd.f32 %v878, %v950
    %v954 = vtanh.pop %v953
    %v955 = vxor.u32 %v953, 2147483648
    %v956 = vmul.f32 %v955, 1.442695
    %v957 = vpow.pop %v956
    %v958 = vadd.f32 %v957, 1.0
    %v959 = vrcp.pop %v958
    %v960 = vmul.f32 1.0, %v959
    %v961 = vsel %vm233, %v954, %v960
    %v962 = vmul.f32 %v961, %v865
    %964 = vrot.lane.b32.xlu0 %v961, 64
    %v965 = vpop.permute.xlu0 %964
    %v967 = vmul.f32 %v961, %v965
    %969 = vrot.lane.b32.xlu0 %v967, 32
    %v970 = vpop.permute.xlu0 %969
    %v972 = vadd.f32 %v962, %v970
    %v973 = vtanh.pop %v972
    %975 = vrot.lane.b32.xlu0 %v973, 64
    %v976 = vpop.permute.xlu0 %975
    %v978 = vmul.f32 %v961, %v976
    %980 = vrot.lane.b32.xlu0 %v978, 96
    %v981 = vpop.permute.xlu0 %980
    %983 = vst.msk [vmem:[#allocation11 + $0x8] sm:$0xff] %vm558, %v981
    %s984 = scalar_lea.vmem [#allocation2], 56
    %v985 = vld [vmem:[%s984] sm:$0xff]
    %986 = vrot.lane.b32.xlu0 %v978, 32
    %v987 = vpop.permute.xlu0 %986
    %v988 = vsel %vm237, %v987, 0
    %990 = vmatprep.subr.mxu0 0.0
    %991 = vmatpush1.msra.mxu0 %v225
    %992 = vmatprep.subr.mxu0 0.0
    %993 = vmatpush1.msra.mxu0 %v226
    %994 = vmatprep.subr.mxu0 0.0
    %995 = vmatpush1.msra.mxu0 %v227
    %996 = vmatprep.subr.mxu0 0.0
    %997 = vmatpush1.msra.mxu0 %v228
    %998 = vmatprep.subr.mxu0 0.0
    %999 = vmatpush1.msra.mxu0 0.0
    %1000 = vmatprep.subr.mxu0 0.0
    %1001 = vmatpush1.msra.mxu0 0.0
    %1002 = vmatprep.subr.mxu0 0.0
    %1003 = vmatpush1.msra.mxu0 0.0
    %1004 = vmatprep.subr.mxu0 0.0
    %1005 = vmatpush1.msra.mxu0 0.0
    %1006 = vmatprep.subr.mxu0 0.0
    %1007 = vmatpush1.msra.mxu0 0.0
    %1008 = vmatprep.subr.mxu0 0.0
    %1009 = vmatpush1.msra.mxu0 0.0
    %1010 = vmatprep.subr.mxu0 0.0
    %1011 = vmatpush1.msra.mxu0 0.0
    %1012 = vmatprep.subr.mxu0 0.0
    %1013 = vmatpush1.msra.mxu0 0.0
    %1014 = vmatprep.subr.mxu0 0.0
    %1015 = vmatpush1.msra.mxu0 0.0
    %1016 = vmatprep.subr.mxu0 0.0
    %1017 = vmatpush1.msra.mxu0 0.0
    %1018 = vmatprep.subr.mxu0 0.0
    %1019 = vmatpush1.msra.mxu0 0.0
    %1020 = vmatprep.subr.mxu0 0.0
    %1021 = vmatpush1.msra.mxu0 0.0
    %1022 = vmatprep.subr.mxu0 0.0
    %1023 = vmatpush1.msra.mxu0 0.0
    %1024 = vmatprep.subr.mxu0 0.0
    %1025 = vmatpush1.msra.mxu0 0.0
    %1026 = vmatprep.subr.mxu0 0.0
    %1027 = vmatpush1.msra.mxu0 0.0
    %1028 = vmatprep.subr.mxu0 0.0
    %1029 = vmatpush1.msra.mxu0 0.0
    %1030 = vmatprep.subr.mxu0 0.0
    %1031 = vmatpush1.msra.mxu0 0.0
    %1032 = vmatprep.subr.mxu0 0.0
    %1033 = vmatpush1.msra.mxu0 0.0
    %1034 = vmatprep.subr.mxu0 0.0
    %1035 = vmatpush1.msra.mxu0 0.0
    %1036 = vmatprep.subr.mxu0 0.0
    %1037 = vmatpush1.msra.mxu0 0.0
    %1038 = vmatprep.subr.mxu0 0.0
    %1039 = vmatpush1.msra.mxu0 0.0
    %1040 = vmatprep.subr.mxu0 0.0
    %1041 = vmatpush1.msra.mxu0 0.0
    %1042 = vmatprep.subr.mxu0 0.0
    %1043 = vmatpush1.msra.mxu0 0.0
    %1044 = vmatprep.subr.mxu0 0.0
    %1045 = vmatpush1.msra.mxu0 0.0
    %1046 = vmatprep.subr.mxu0 0.0
    %1047 = vmatpush1.msra.mxu0 0.0
    %1048 = vmatprep.subr.mxu0 0.0
    %1049 = vmatpush1.msra.mxu0 0.0
    %1050 = vmatprep.subr.mxu0 0.0
    %1051 = vmatpush1.msra.mxu0 0.0
    %1052 = vmatprep.subr.mxu0 0.0
    %1053 = vmatpush1.msra.mxu0 0.0
    %1054 = vmatprep.mubr.f32.mxu0 0.0
    %1055 = vmatmul.mubr.f32.gmra.mrb[0].mxu0 %v988
    %v1056 = vpop.f32.mrb[0].mxu0
    %v1057 = vadd.f32 0.0, %v1056
    %v1058 = vpop.f32.mrb[0].mxu0
    %1059 = vdwg.mxu0
    %v1060 = vadd.f32 %v985, %v1057
    %v1061 = vtanh.pop %v1060
    %v1062 = vxor.u32 %v1060, 2147483648
    %v1063 = vmul.f32 %v1062, 1.442695
    %v1064 = vpow.pop %v1063
    %v1065 = vadd.f32 %v1064, 1.0
    %v1066 = vrcp.pop %v1065
    %v1067 = vmul.f32 1.0, %v1066
    %v1068 = vsel %vm233, %v1061, %v1067
    %v1069 = vmul.f32 %v1068, %v972
    %1071 = vrot.lane.b32.xlu0 %v1068, 64
    %v1072 = vpop.permute.xlu0 %1071
    %v1074 = vmul.f32 %v1068, %v1072
    %1076 = vrot.lane.b32.xlu0 %v1074, 32
    %v1077 = vpop.permute.xlu0 %1076
    %v1079 = vadd.f32 %v1069, %v1077
    %v1080 = vtanh.pop %v1079
    %1082 = vrot.lane.b32.xlu0 %v1080, 64
    %v1083 = vpop.permute.xlu0 %1082
    %v1085 = vmul.f32 %v1068, %v1083
    %1086 = vst.msk [vmem:[#allocation11 + $0x8] sm:$0xff] %vm662, %v1085
    %1088 = vrot.lane.b32.xlu0 %v1085, 32
    %v1089 = vpop.permute.xlu0 %1088
    %1091 = vst.msk [vmem:[#allocation3] sm:$0xff] %vm237, %v1089
    %1093 = vrot.lane.b32.xlu0 %v1079, 96
    %v1094 = vpop.permute.xlu0 %1093
    %1096 = vst.msk [vmem:[#allocation4] sm:$0xff] %vm237, %v1094
    // Predicated region
    $region34: #{tpu_custom_call.1} parent=1 // pred_check
      %p1097 = pneg %p63
    $region35: #{tpu_custom_call.1} parent=1 // pred_check_branch
      %1099 = sbr.rel (%p1097) target = $region37
    $region36: #{tpu_custom_call.1} parent=1 // pred_region
      %1100 = vst.msk [vmem:[#allocation12] sm:$0xff] %vm237, %v1089
      %1101 = vst.msk [vmem:[#allocation14] sm:$0xff] %vm237, %v1094
    $region37: #{tpu_custom_call.1} parent=1 // pred_fallthru
      _
    // Predicated region
    $region38: #{tpu_custom_call.1} parent=1 // pred_check
      _
    $region39: #{tpu_custom_call.1} parent=1 // pred_check_branch
      %1103 = sbr.rel (0) target = $region41
    $region40: #{tpu_custom_call.1} parent=1 // pred_region
      %s1105 = ssub.s32 256, 256
      %1106 = vsyncadd [#allocation7], %s1105
      %s1108 = sshll.u32 [#allocation11], 4
      %s1109 = int_to_ptr.vmem [resolvable:$true] %s1108
      %1111 = dma.vmem_to_hbm [thread:$0]  %s1109, 256, %s4, [#allocation7]
    $region41: #{tpu_custom_call.1} parent=1 // pred_fallthru
      _
    // Predicated region
    $region42: #{tpu_custom_call.1} parent=1 // pred_check
      _
    $region43: #{tpu_custom_call.1} parent=1 // pred_check_branch
      %1113 = sbr.rel (0) target = $region45
    $region44: #{tpu_custom_call.1} parent=1 // pred_region
      %s1115 = ssub.s32 128, 128
      %1116 = vsyncadd [#allocation13], %s1115
      %s1118 = sshll.u32 [#allocation12], 4
      %s1119 = int_to_ptr.vmem [resolvable:$true] %s1118
      %1121 = dma.vmem_to_hbm [thread:$0]  %s1119, 128, %s5, [#allocation13]
    $region45: #{tpu_custom_call.1} parent=1 // pred_fallthru
      _
    // Predicated region
    $region46: #{tpu_custom_call.1} parent=1 // pred_check
      _
    $region47: #{tpu_custom_call.1} parent=1 // pred_check_branch
      %1123 = sbr.rel (0) target = $region49
    $region48: #{tpu_custom_call.1} parent=1 // pred_region
      %s1125 = ssub.s32 128, 128
      %1126 = vsyncadd [#allocation13], %s1125
      %s1128 = sshll.u32 [#allocation14], 4
      %s1129 = int_to_ptr.vmem [resolvable:$true] %s1128
      %1131 = dma.vmem_to_hbm [thread:$0]  %s1129, 128, %s6, [#allocation13]
    $region49: #{tpu_custom_call.1} parent=1 // pred_fallthru
      _
    // Predicated region
    $region50: #{tpu_custom_call.1} parent=1 // pred_check
      _
    $region51: #{tpu_custom_call.1} parent=1 // pred_check_branch
      %1133 = sbr.rel (0) target = $region53
    $region52: #{tpu_custom_call.1} parent=1 // pred_region
      %1134 = dma.done [#allocation7], 256
    $region53: #{tpu_custom_call.1} parent=1 // pred_fallthru
      _
    // Predicated region
    $region54: #{tpu_custom_call.1} parent=1 // pred_check
      _
    $region55: #{tpu_custom_call.1} parent=1 // pred_check_branch
      %1136 = sbr.rel (0) target = $region57
    $region56: #{tpu_custom_call.1} parent=1 // pred_region
      %1137 = dma.done [#allocation13], 128
    $region57: #{tpu_custom_call.1} parent=1 // pred_fallthru
      _
    // Predicated region
    $region58: #{tpu_custom_call.1} parent=1 // pred_check
      _
    $region59: #{tpu_custom_call.1} parent=1 // pred_check_branch
      %1139 = sbr.rel (0) target = $region61
    $region60: #{tpu_custom_call.1} parent=1 // pred_region
      %1140 = dma.done [#allocation13], 128
    $region61: #{tpu_custom_call.1} parent=1 // pred_fallthru
      _
    %1141 = vsyncpa [#allocation6], 1
    %1142 = vsyncpa [#allocation9], 1
    %1143 = vsyncpa [#allocation7], 1
    %1144 = vsyncpa [#allocation13], 1

</llo_original>
